<compile_context>
chip_gen: v6e
topology: v6e:2x2x1
jax: 0.10.0
libtpu: 0.0.40
codegen_flags: <defaults>
</compile_context>

<pallas_src>
import functools

import jax
import jax.numpy as jnp
from jax import lax
from jax.experimental import pallas as pl
from jax.experimental.pallas import tpu as pltpu

_LANE = 128


def _round_up(x, m):
    return (x + m - 1) // m * m


# --------------------------------------------------------------------------- #
# One-time weight reformulation (hoisted out of the per-forward path).
# --------------------------------------------------------------------------- #
def _conv0_lane_matrix(w0, W, W0, P, scale):
    """(K, W*Cin, W0*Cout): nearest W-upsample(x scale) + zero W-pad(P) + kw taps
    + Cin->Cout mixing, all folded along the lane axis; one matrix per kh."""
    K, _, Cin, Cout = w0.shape
    Wu = W * scale
    wo = jnp.arange(W0)
    kw = jnp.arange(K)
    b = wo[None, :] + kw[:, None]                       # (K, W0) padded upsampled col
    valid = (b >= P) & (b < Wu + P)                     # inside the zero-pad border
    src = jnp.clip((b - P) // scale, 0, W - 1)          # original col (nearest)
    sel = (src[:, None, :] == jnp.arange(W)[None, :, None]) & valid[:, None, :]
    S = sel.astype(w0.dtype)                            # (K, W, W0)
    T = jnp.einsum('kiw,hkcd->hicwd', S, w0)            # (K, W, Cin, W0, Cout)
    return T.reshape(K, W * Cin, W0 * Cout)


def _conv1_lane_matrix(w1, W0, W1, P):
    """(K, W0*Cmid, W1*Cout): zero W-pad(P) + kw taps + channel mixing, per kh."""
    K, _, Cmid, Cout = w1.shape
    wo = jnp.arange(W1)
    kw = jnp.arange(K)
    b = wo[None, :] + kw[:, None]                       # (K, W1) padded col
    valid = (b >= P) & (b < W0 + P)
    src = jnp.clip(b - P, 0, W0 - 1)
    sel = (src[:, None, :] == jnp.arange(W0)[None, :, None]) & valid[:, None, :]
    S = sel.astype(w1.dtype)                            # (K, W0, W1)
    T = jnp.einsum('kiw,hkcd->hicwd', S, w1)            # (K, W0, Cmid, W1, Cout)
    return T.reshape(K, W0 * Cmid, W1 * Cout)


def prepare_decoder_conv_block(w0, b0, w1, b1, *, height, width, padding=1,
                               scale_factor=2, compute_dtype=jnp.bfloat16):
    """One-time reformulation of the DecoderConvBlock parameters.

    Call at parameter-load time, NOT per forward call.  Returns
      t0_eo: (3*WCinP, 2*W0*Cout)  conv0 even/odd lane-Toeplitz matrix (nearest
             W-upsample, W zero-pad, kw taps, kh taps, Cin->Cout all folded into one
             contraction),
      b0_eo: (1, 2*W0*Cout) f32 lane-tiled bias,
      t1_eo: (4*W0*Cout, 2*W1*Cout) conv1 even/odd matrix,
      b1_eo: (1, 2*W1*Cout) f32 lane-tiled bias.
    """
    K, _, cin, cout = w0.shape
    P, S, H, W = padding, scale_factor, height, width
    if not (K == 3 and P == 1 and S == 2):
        # TODO(synk): general kernel_size/padding/scale needs a different row folding
        # (the even/odd split assumes 3x3 convs, padding 1, nearest x2 upsample).
        raise NotImplementedError(
            "Pallas DecoderConvBlock is specialised for kernel_size=3, padding=1, "
            "scale_factor=2, mode='nearest'")
    Hu, Wu = H * S, W * S
    H0, W0 = Hu + 2 * P - K + 1, Wu + 2 * P - K + 1     # conv0 output
    H1, W1 = H0 + 2 * P - K + 1, W0 + 2 * P - K + 1     # conv1 output
    assert H0 == 2 * H and H1 == H0 and W1 == W0
    w0c, w1c = W0 * cout, W1 * cout
    assert w0c % _LANE == 0 and w1c % _LANE == 0, "W*Cout must be a multiple of 128"
    wcin = W * cin
    wcinp = _round_up(wcin, _LANE)

    f32 = jnp.float32
    t0 = _conv0_lane_matrix(w0.astype(f32), W, W0, P, S)     # (3, W*Cin, W0C)
    t1 = _conv1_lane_matrix(w1.astype(f32), W0, W1, P)       # (3, W0C,  W1C)
    # Pad conv0's input-lane axis so the in-kernel lane concatenation is 128-aligned.
    t0 = jnp.pad(t0, ((0, 0), (0, wcinp - wcin), (0, 0)))

    z0 = jnp.zeros((wcinp, w0c), f32)
    # Even conv0 rows: x[m-1] @ t0[0] + x[m] @ (t0[1] + t0[2])
    # Odd  conv0 rows: x[m]   @ (t0[0] + t0[1]) + x[m+1] @ t0[2]
    t0_eo = jnp.concatenate([
        jnp.concatenate([t0[0],         z0           ], axis=1),
        jnp.concatenate([t0[1] + t0[2], t0[0] + t0[1]], axis=1),
        jnp.concatenate([z0,            t0[2]        ], axis=1),
    ], axis=0)                                               # (3*WCinP, 2*W0C)

    z1 = jnp.zeros((w0c, w1c), f32)
    # Even out rows: O[m-1] @ t1[0] + E[m] @ t1[1] + O[m]   @ t1[2]
    # Odd  out rows: E[m]   @ t1[0] + O[m] @ t1[1] + E[m+1] @ t1[2]
    t1_eo = jnp.concatenate([
        jnp.concatenate([t1[0], z1   ], axis=1),
        jnp.concatenate([t1[1], t1[0]], axis=1),
        jnp.concatenate([t1[2], t1[1]], axis=1),
        jnp.concatenate([z1,    t1[2]], axis=1),
    ], axis=0)                                               # (4*W0C, 2*W1C)

    b0_eo = jnp.tile(b0.astype(f32), 2 * W0).reshape(1, 2 * w0c)
    b1_eo = jnp.tile(b1.astype(f32), 2 * W1).reshape(1, 2 * w1c)
    return (t0_eo.astype(compute_dtype), b0_eo,
            t1_eo.astype(compute_dtype), b1_eo)


# --------------------------------------------------------------------------- #
# Fused Pallas kernel: upsample + pad + conv0 + bias + pad + conv1 + bias + ReLU
# --------------------------------------------------------------------------- #
def _dec_conv_block_kernel(x_ref, t0_ref, b0_ref, t1_ref, b1_ref, o_ref, *,
                           rows_per_image, half0):
    h = rows_per_image
    x = x_ref[...]                                           # (R, WCinP), f32
    r = x.shape[0]

    def edge_masks(width):
        rid = lax.broadcasted_iota(jnp.int32, (r, width), 0)
        return (rid % h) == 0, (rid % h) == (h - 1)

    # ---- conv0 (+ fused nearest x2 upsample + zero pad), even/odd rows at once ----
    first_x, last_x = edge_masks(x.shape[1])
    xm1 = jnp.where(first_x, jnp.zeros_like(x), pltpu.roll(x, shift=1, axis=0))
    xp1 = jnp.where(last_x, jnp.zeros_like(x), pltpu.roll(x, shift=r - 1, axis=0))
    a0 = jnp.concatenate([xm1, x, xp1], axis=1)              # (R, 3*WCinP)
    y0 = jnp.dot(a0.astype(t0_ref.dtype), t0_ref[...],
                 preferred_element_type=jnp.float32)
    y0 = y0 + b0_ref[...]                                    # (R, 2*W0C) = [even|odd]

    # ---- conv1 + bias + ReLU, still in the even/odd row domain ----
    ev = y0[:, :half0]
    od = y0[:, half0:]
    first_e, last_e = edge_masks(half0)
    om1 = jnp.where(first_e, jnp.zeros_like(od), pltpu.roll(od, shift=1, axis=0))
    ep1 = jnp.where(last_e, jnp.zeros_like(ev), pltpu.roll(ev, shift=r - 1, axis=0))
    a1 = jnp.concatenate([om1, ev, od, ep1], axis=1)         # (R, 4*W0C)
    y1 = jnp.dot(a1.astype(t1_ref.dtype), t1_ref[...],
                 preferred_element_type=jnp.float32)
    o_ref[...] = jnp.maximum(y1 + b1_ref[...], 0.0).astype(o_ref.dtype)


def _choose_block_batch(n, rows_per_image, target_rows=256):
    """Largest per-step batch NB (divisor of n) with M = NB*rows <= ~256 rows that
    still leaves >= 2 grid steps when n >= 2 (so v7x's two TCs both get work)."""
    cap = max(1, target_rows // rows_per_image)
    cands = [d for d in range(1, n + 1)
             if n % d == 0 and d <= cap and n // d >= 2]
    return max(cands) if cands else 1


@functools.partial(jax.jit, static_argnames=("cout",))
def decoder_conv_block_apply(x_nchw, t0_eo, b0_eo, t1_eo, b1_eo, *, cout):
    """Forward pass: NCHW in / NCHW out, parameters from prepare_decoder_conv_block."""
    n, cin, h, w = x_nchw.shape
    wcin = w * cin
    wcinp = _round_up(wcin, _LANE)
    w0c2 = b0_eo.shape[1]            # 2 * W0 * Cout  (even|odd conv0 lanes)
    w1c2 = b1_eo.shape[1]            # 2 * W1 * Cout  (even|odd output lanes)
    w1 = (w1c2 // 2) // cout
    h1 = 2 * h                       # K=3, P=1, S=2  =>  H1 = H0 = 2*H
    assert t0_eo.shape == (3 * wcinp, w0c2), (t0_eo.shape, wcinp, w0c2)
    assert t1_eo.shape == (2 * w0c2, w1c2), t1_eo.shape

    # NCHW -> lane-dense rows (N*H, WCinP); activations stay f32, only the matmul
    # operands are cast to the (bf16) weight dtype inside the kernel.
    x_rows = jnp.transpose(x_nchw, (0, 2, 3, 1)).reshape(n * h, wcin)
    if wcinp != wcin:
        x_rows = jnp.pad(x_rows, ((0, 0), (0, wcinp - wcin)))

    nb = _choose_block_batch(n, h)
    r = nb * h
    grid = (n // nb,)

    kernel = functools.partial(_dec_conv_block_kernel,
                               rows_per_image=h, half0=w0c2 // 2)

    out_rows = pl.pallas_call(
        kernel,
        out_shape=jax.ShapeDtypeStruct((n * h, w1c2), x_nchw.dtype),
        grid_spec=pltpu.PrefetchScalarGridSpec(
            num_scalar_prefetch=0,
            grid=grid,
            in_specs=[
                pl.BlockSpec((r, wcinp), lambda i: (i, 0)),
                # Constant-index weight/bias blocks (fetched once, reused every step).
                # NOTE: at much larger W*Cout, switch these to single-buffered /
                # output-lane-tiled specs so the (W*Cout)^2 Toeplitz weights fit VMEM.
                pl.BlockSpec((3 * wcinp, w0c2), lambda i: (0, 0)),
                pl.BlockSpec((1, w0c2), lambda i: (0, 0)),
                pl.BlockSpec((2 * w0c2, w1c2), lambda i: (0, 0)),
                pl.BlockSpec((1, w1c2), lambda i: (0, 0)),
            ],
            out_specs=pl.BlockSpec((r, w1c2), lambda i: (i, 0)),
        ),
        compiler_params=pltpu.CompilerParams(
            dimension_semantics=("parallel",)),
    )(x_rows, t0_eo, b0_eo, t1_eo, b1_eo)

    # Each row holds [even output row | odd output row]; row-major order
    # (n, m, parity, w, c) de-interleaves with a plain reshape.
    out = out_rows.reshape(n, h1, w1, cout)
    # TODO(synk): drop the NCHW<->lane-dense transposes once the surrounding model
    # consumes NHWC / lane-dense activations directly.
    return jnp.transpose(out, (0, 3, 1, 2))


# --------------------------------------------------------------------------- #
# Pure-JAX reference (torch semantics: nearest upsample + cross-correlation convs)
# --------------------------------------------------------------------------- #
def _reference(x_nchw, w0, b0, w1, b1, padding=1, scale_factor=2):
    x = jnp.transpose(x_nchw, (0, 2, 3, 1))
    x = jnp.repeat(jnp.repeat(x, scale_factor, axis=1), scale_factor, axis=2)
    dn = ("NHWC", "HWIO", "NHWC")
    pad = [(padding, padding), (padding, padding)]
    y = lax.conv_general_dilated(x, w0, (1, 1), pad, dimension_numbers=dn) + b0
    y = lax.conv_general_dilated(y, w1, (1, 1), pad, dimension_numbers=dn) + b1
    y = jnp.maximum(y, 0.0)
    return jnp.transpose(y, (0, 3, 1, 2))


if __name__ == "__main__":
    # Module config: channels_in=4, channels_out=8, kernel_size=3, padding=1,
    # scale_factor=2, mode='nearest', activation='ReLU'.
    N, Cin, H, W = 2, 4, 16, 16
    Cout, K, P, SCALE = 8, 3, 1, 2

    key = jax.random.PRNGKey(0)
    kx, kw0, kb0, kw1, kb1 = jax.random.split(key, 5)
    x = jax.random.normal(kx, (N, Cin, H, W), jnp.float32)
    w0 = jax.random.normal(kw0, (K, K, Cin, Cout), jnp.float32) / (K * K * Cin) ** 0.5
    b0 = 0.1 * jax.random.normal(kb0, (Cout,), jnp.float32)
    w1 = jax.random.normal(kw1, (K, K, Cout, Cout), jnp.float32) / (K * K * Cout) ** 0.5
    b1 = 0.1 * jax.random.normal(kb1, (Cout,), jnp.float32)

    ref = jax.block_until_ready(_reference(x, w0, b0, w1, b1, P, SCALE))

    # f32 MXU operands: strict check of the fused structure.
    params_f32 = prepare_decoder_conv_block(
        w0, b0, w1, b1, height=H, width=W, padding=P, scale_factor=SCALE,
        compute_dtype=jnp.float32)
    out_f32 = jax.block_until_ready(
        decoder_conv_block_apply(x, *params_f32, cout=Cout))
    assert out_f32.shape == (N, Cout, H * SCALE, W * SCALE), out_f32.shape
    assert jnp.allclose(out_f32, ref, rtol=1e-3, atol=1e-3), \
        f"f32 max abs err = {jnp.max(jnp.abs(out_f32 - ref))}"

    # bf16 MXU operands with f32 accumulation: the performance configuration.
    params_bf16 = prepare_decoder_conv_block(
        w0, b0, w1, b1, height=H, width=W, padding=P, scale_factor=SCALE,
        compute_dtype=jnp.bfloat16)
    out_bf16 = jax.block_until_ready(
        decoder_conv_block_apply(x, *params_bf16, cout=Cout))
    assert out_bf16.shape == (N, Cout, H * SCALE, W * SCALE), out_bf16.shape
    assert jnp.allclose(out_bf16, ref, rtol=5e-2, atol=5e-2), \
        f"bf16 max abs err = {jnp.max(jnp.abs(out_bf16 - ref))}"

    print("KERNEL_OK")
</pallas_src>

<mosaic_0001>
module attributes {stable_mosaic.version = 11 : i64} {
  func.func @_dec_conv_block_kernel(%arg0: i32, %arg1: memref<16x128xf32, #tpu.memory_space<vmem>>, %arg2: memref<384x512xf32, #tpu.memory_space<vmem>>, %arg3: memref<1x512xf32, #tpu.memory_space<vmem>>, %arg4: memref<1024x512xf32, #tpu.memory_space<vmem>>, %arg5: memref<1x512xf32, #tpu.memory_space<vmem>>, %arg6: memref<16x512xf32, #tpu.memory_space<vmem>>) attributes {dimension_semantics = [#tpu.dimension_semantics<parallel>], iteration_bounds = array<i64: 2>, scalar_prefetch = 0 : i64, scratch_operands = 0 : i64, tpu.core_type = #tpu.core_type<tc>, window_params = [{transform_indices = @transform_0, window_bounds = array<i64: 16, 128>}, {pipeline_mode = #tpu.pipeline_mode<synchronous>, transform_indices = @transform_1, window_bounds = array<i64: 384, 512>}, {pipeline_mode = #tpu.pipeline_mode<synchronous>, transform_indices = @transform_2, window_bounds = array<i64: 1, 512>}, {pipeline_mode = #tpu.pipeline_mode<synchronous>, transform_indices = @transform_3, window_bounds = array<i64: 1024, 512>}, {pipeline_mode = #tpu.pipeline_mode<synchronous>, transform_indices = @transform_4, window_bounds = array<i64: 1, 512>}, {transform_indices = @transform_5, window_bounds = array<i64: 16, 512>}]} {
    %c0 = arith.constant 0 : index
    %c0_0 = arith.constant 0 : index
    %0 = vector.load %arg1[%c0, %c0_0] : memref<16x128xf32, #tpu.memory_space<vmem>>, vector<16x128xf32>
    %1 = tpu.iota {dimensions = array<i32: 0>} : vector<16x128xi32>
    %c16_i32 = arith.constant 16 : i32
    %c0_i32 = arith.constant 0 : i32
    %2 = arith.cmpi eq, %c16_i32, %c0_i32 : i32
    %c1_i32 = arith.constant 1 : i32
    %3 = arith.select %2, %c1_i32, %c16_i32 : i32
    %4 = vector.broadcast %3 : i32 to vector<16x128xi32>
    %5 = arith.remsi %1, %4 : vector<16x128xi32>
    %c0_i32_1 = arith.constant 0 : i32
    %6 = vector.broadcast %c0_i32_1 : i32 to vector<16x128xi32>
    %7 = arith.cmpi ne, %5, %6 : vector<16x128xi32>
    %c0_i32_2 = arith.constant 0 : i32
    %8 = vector.broadcast %c0_i32_2 : i32 to vector<16x128xi32>
    %9 = arith.cmpi slt, %5, %8 : vector<16x128xi32>
    %c0_i32_3 = arith.constant 0 : i32
    %10 = arith.cmpi slt, %3, %c0_i32_3 : i32
    %11 = vector.broadcast %10 : i1 to vector<16x128xi1>
    %12 = vector.broadcast %11 : vector<16x128xi1> to vector<16x128xi1>
    %13 = arith.xori %9, %12 : vector<16x128xi1>
    %14 = arith.andi %13, %7 : vector<16x128xi1>
    %15 = vector.broadcast %3 : i32 to vector<16x128xi32>
    %16 = arith.addi %5, %15 : vector<16x128xi32>
    %17 = arith.select %14, %16, %5 : vector<16x128xi1>, vector<16x128xi32>
    %c0_i32_4 = arith.constant 0 : i32
    %18 = vector.broadcast %c0_i32_4 : i32 to vector<16x128xi32>
    %19 = arith.cmpi eq, %17, %18 : vector<16x128xi32>
    %c16_i32_5 = arith.constant 16 : i32
    %c0_i32_6 = arith.constant 0 : i32
    %20 = arith.cmpi eq, %c16_i32_5, %c0_i32_6 : i32
    %c1_i32_7 = arith.constant 1 : i32
    %21 = arith.select %20, %c1_i32_7, %c16_i32_5 : i32
    %22 = vector.broadcast %21 : i32 to vector<16x128xi32>
    %23 = arith.remsi %1, %22 : vector<16x128xi32>
    %c0_i32_8 = arith.constant 0 : i32
    %24 = vector.broadcast %c0_i32_8 : i32 to vector<16x128xi32>
    %25 = arith.cmpi ne, %23, %24 : vector<16x128xi32>
    %c0_i32_9 = arith.constant 0 : i32
    %26 = vector.broadcast %c0_i32_9 : i32 to vector<16x128xi32>
    %27 = arith.cmpi slt, %23, %26 : vector<16x128xi32>
    %c0_i32_10 = arith.constant 0 : i32
    %28 = arith.cmpi slt, %21, %c0_i32_10 : i32
    %29 = vector.broadcast %28 : i1 to vector<16x128xi1>
    %30 = vector.broadcast %29 : vector<16x128xi1> to vector<16x128xi1>
    %31 = arith.xori %27, %30 : vector<16x128xi1>
    %32 = arith.andi %31, %25 : vector<16x128xi1>
    %33 = vector.broadcast %21 : i32 to vector<16x128xi32>
    %34 = arith.addi %23, %33 : vector<16x128xi32>
    %35 = arith.select %32, %34, %23 : vector<16x128xi1>, vector<16x128xi32>
    %c15_i32 = arith.constant 15 : i32
    %36 = vector.broadcast %c15_i32 : i32 to vector<16x128xi32>
    %37 = arith.cmpi eq, %35, %36 : vector<16x128xi32>
    %cst = arith.constant 0.000000e+00 : f32
    %38 = vector.broadcast %cst : f32 to vector<16x128xf32>
    %c1_i32_11 = arith.constant 1 : i32
    %39 = tpu.dynamic_rotate %0 by %c1_i32_11 dim 0 : vector<16x128xf32>, i32 -> vector<16x128xf32>
    %40 = arith.select %19, %38, %39 : vector<16x128xi1>, vector<16x128xf32>
    %cst_12 = arith.constant 0.000000e+00 : f32
    %41 = vector.broadcast %cst_12 : f32 to vector<16x128xf32>
    %c15_i32_13 = arith.constant 15 : i32
    %42 = tpu.dynamic_rotate %0 by %c15_i32_13 dim 0 : vector<16x128xf32>, i32 -> vector<16x128xf32>
    %43 = arith.select %37, %41, %42 : vector<16x128xi1>, vector<16x128xf32>
    %44 = tpu.concatenate %40, %0, %43 in 1 : vector<16x128xf32>, vector<16x128xf32>, vector<16x128xf32> -> vector<16x384xf32>
    %c0_14 = arith.constant 0 : index
    %c0_15 = arith.constant 0 : index
    %45 = vector.load %arg2[%c0_14, %c0_15] : memref<384x512xf32, #tpu.memory_space<vmem>>, vector<384x512xf32>
    %cst_16 = arith.constant dense<0.000000e+00> : vector<16x512xf32>
    %46 = tpu.matmul %44, %45, %cst_16 {dimension_numbers = #tpu.dot_dimension_numbers<[1], [0], [0], [1], [0, 0, 1, 1], [], []>} : vector<16x384xf32>, vector<384x512xf32>, vector<16x512xf32> -> vector<16x512xf32>
    %c0_17 = arith.constant 0 : index
    %c0_18 = arith.constant 0 : index
    %47 = vector.load %arg3[%c0_17, %c0_18] : memref<1x512xf32, #tpu.memory_space<vmem>>, vector<1x512xf32>
    %48 = vector.broadcast %47 : vector<1x512xf32> to vector<16x512xf32>
    %49 = arith.addf %46, %48 : vector<16x512xf32>
    %50 = vector.extract_strided_slice %49 {offsets = [0, 0], sizes = [16, 256], strides = [1, 1]} : vector<16x512xf32> to vector<16x256xf32>
    %51 = vector.extract_strided_slice %49 {offsets = [0, 256], sizes = [16, 256], strides = [1, 1]} : vector<16x512xf32> to vector<16x256xf32>
    %52 = tpu.iota {dimensions = array<i32: 0>} : vector<16x256xi32>
    %c16_i32_19 = arith.constant 16 : i32
    %c0_i32_20 = arith.constant 0 : i32
    %53 = arith.cmpi eq, %c16_i32_19, %c0_i32_20 : i32
    %c1_i32_21 = arith.constant 1 : i32
    %54 = arith.select %53, %c1_i32_21, %c16_i32_19 : i32
    %55 = vector.broadcast %54 : i32 to vector<16x256xi32>
    %56 = arith.remsi %52, %55 : vector<16x256xi32>
    %c0_i32_22 = arith.constant 0 : i32
    %57 = vector.broadcast %c0_i32_22 : i32 to vector<16x256xi32>
    %58 = arith.cmpi ne, %56, %57 : vector<16x256xi32>
    %c0_i32_23 = arith.constant 0 : i32
    %59 = vector.broadcast %c0_i32_23 : i32 to vector<16x256xi32>
    %60 = arith.cmpi slt, %56, %59 : vector<16x256xi32>
    %c0_i32_24 = arith.constant 0 : i32
    %61 = arith.cmpi slt, %54, %c0_i32_24 : i32
    %62 = vector.broadcast %61 : i1 to vector<16x256xi1>
    %63 = vector.broadcast %62 : vector<16x256xi1> to vector<16x256xi1>
    %64 = arith.xori %60, %63 : vector<16x256xi1>
    %65 = arith.andi %64, %58 : vector<16x256xi1>
    %66 = vector.broadcast %54 : i32 to vector<16x256xi32>
    %67 = arith.addi %56, %66 : vector<16x256xi32>
    %68 = arith.select %65, %67, %56 : vector<16x256xi1>, vector<16x256xi32>
    %c0_i32_25 = arith.constant 0 : i32
    %69 = vector.broadcast %c0_i32_25 : i32 to vector<16x256xi32>
    %70 = arith.cmpi eq, %68, %69 : vector<16x256xi32>
    %c16_i32_26 = arith.constant 16 : i32
    %c0_i32_27 = arith.constant 0 : i32
    %71 = arith.cmpi eq, %c16_i32_26, %c0_i32_27 : i32
    %c1_i32_28 = arith.constant 1 : i32
    %72 = arith.select %71, %c1_i32_28, %c16_i32_26 : i32
    %73 = vector.broadcast %72 : i32 to vector<16x256xi32>
    %74 = arith.remsi %52, %73 : vector<16x256xi32>
    %c0_i32_29 = arith.constant 0 : i32
    %75 = vector.broadcast %c0_i32_29 : i32 to vector<16x256xi32>
    %76 = arith.cmpi ne, %74, %75 : vector<16x256xi32>
    %c0_i32_30 = arith.constant 0 : i32
    %77 = vector.broadcast %c0_i32_30 : i32 to vector<16x256xi32>
    %78 = arith.cmpi slt, %74, %77 : vector<16x256xi32>
    %c0_i32_31 = arith.constant 0 : i32
    %79 = arith.cmpi slt, %72, %c0_i32_31 : i32
    %80 = vector.broadcast %79 : i1 to vector<16x256xi1>
    %81 = vector.broadcast %80 : vector<16x256xi1> to vector<16x256xi1>
    %82 = arith.xori %78, %81 : vector<16x256xi1>
    %83 = arith.andi %82, %76 : vector<16x256xi1>
    %84 = vector.broadcast %72 : i32 to vector<16x256xi32>
    %85 = arith.addi %74, %84 : vector<16x256xi32>
    %86 = arith.select %83, %85, %74 : vector<16x256xi1>, vector<16x256xi32>
    %c15_i32_32 = arith.constant 15 : i32
    %87 = vector.broadcast %c15_i32_32 : i32 to vector<16x256xi32>
    %88 = arith.cmpi eq, %86, %87 : vector<16x256xi32>
    %cst_33 = arith.constant 0.000000e+00 : f32
    %89 = vector.broadcast %cst_33 : f32 to vector<16x256xf32>
    %c1_i32_34 = arith.constant 1 : i32
    %90 = tpu.dynamic_rotate %51 by %c1_i32_34 dim 0 : vector<16x256xf32>, i32 -> vector<16x256xf32>
    %91 = arith.select %70, %89, %90 : vector<16x256xi1>, vector<16x256xf32>
    %cst_35 = arith.constant 0.000000e+00 : f32
    %92 = vector.broadcast %cst_35 : f32 to vector<16x256xf32>
    %c15_i32_36 = arith.constant 15 : i32
    %93 = tpu.dynamic_rotate %50 by %c15_i32_36 dim 0 : vector<16x256xf32>, i32 -> vector<16x256xf32>
    %94 = arith.select %88, %92, %93 : vector<16x256xi1>, vector<16x256xf32>
    %95 = tpu.concatenate %91, %50, %51, %94 in 1 : vector<16x256xf32>, vector<16x256xf32>, vector<16x256xf32>, vector<16x256xf32> -> vector<16x1024xf32>
    %c0_37 = arith.constant 0 : index
    %c0_38 = arith.constant 0 : index
    %96 = vector.load %arg4[%c0_37, %c0_38] : memref<1024x512xf32, #tpu.memory_space<vmem>>, vector<1024x512xf32>
    %cst_39 = arith.constant dense<0.000000e+00> : vector<16x512xf32>
    %97 = tpu.matmul %95, %96, %cst_39 {dimension_numbers = #tpu.dot_dimension_numbers<[1], [0], [0], [1], [0, 0, 1, 1], [], []>} : vector<16x1024xf32>, vector<1024x512xf32>, vector<16x512xf32> -> vector<16x512xf32>
    %c0_40 = arith.constant 0 : index
    %c0_41 = arith.constant 0 : index
    %98 = vector.load %arg5[%c0_40, %c0_41] : memref<1x512xf32, #tpu.memory_space<vmem>>, vector<1x512xf32>
    %99 = vector.broadcast %98 : vector<1x512xf32> to vector<16x512xf32>
    %100 = arith.addf %97, %99 : vector<16x512xf32>
    %cst_42 = arith.constant 0.000000e+00 : f32
    %101 = vector.broadcast %cst_42 : f32 to vector<16x512xf32>
    %102 = arith.maximumf %100, %101 : vector<16x512xf32>
    %c0_43 = arith.constant 0 : index
    %c0_44 = arith.constant 0 : index
    %103 = vector.load %arg6[%c0_43, %c0_44] : memref<16x512xf32, #tpu.memory_space<vmem>>, vector<16x512xf32>
    tpu.vector_store %arg6[%c0_43, %c0_44], %102 {strides = array<i32>} : memref<16x512xf32, #tpu.memory_space<vmem>>, vector<16x512xf32>,
    return
  }
  func.func @transform_0(%arg0: i32) -> (i32, i32) {
    %c0_i32 = arith.constant 0 : i32
    %c0_i32_0 = arith.constant 0 : i32
    return %arg0, %c0_i32 : i32, i32
  }
  func.func @transform_1(%arg0: i32) -> (i32, i32) {
    %c0_i32 = arith.constant 0 : i32
    %c0_i32_0 = arith.constant 0 : i32
    %c0_i32_1 = arith.constant 0 : i32
    return %c0_i32, %c0_i32_0 : i32, i32
  }
  func.func @transform_2(%arg0: i32) -> (i32, i32) {
    %c0_i32 = arith.constant 0 : i32
    %c0_i32_0 = arith.constant 0 : i32
    %c0_i32_1 = arith.constant 0 : i32
    return %c0_i32, %c0_i32_0 : i32, i32
  }
  func.func @transform_3(%arg0: i32) -> (i32, i32) {
    %c0_i32 = arith.constant 0 : i32
    %c0_i32_0 = arith.constant 0 : i32
    %c0_i32_1 = arith.constant 0 : i32
    return %c0_i32, %c0_i32_0 : i32, i32
  }
  func.func @transform_4(%arg0: i32) -> (i32, i32) {
    %c0_i32 = arith.constant 0 : i32
    %c0_i32_0 = arith.constant 0 : i32
    %c0_i32_1 = arith.constant 0 : i32
    return %c0_i32, %c0_i32_0 : i32, i32
  }
  func.func @transform_5(%arg0: i32) -> (i32, i32) {
    %c0_i32 = arith.constant 0 : i32
    %c0_i32_0 = arith.constant 0 : i32
    return %arg0, %c0_i32 : i32, i32
  }
}

</mosaic_0001>

<llo_original>
// kernel: decoder_conv_block_apply.1
$region0: #{decoder_conv_block_apply.1}
  #allocation0 [shape = 'u32[]', space=smem, size = 0x4, offset = 0x4, fixed_abs, tag = 'smem constant byte address 0x4 - core index']
  #allocation1 [shape = 'u32[144,128]{1,0:T(1,128)}', space=vmem, size = 0x12000, scoped, tag = 'internal scratch']
  %s0 = inlined_call_operand.vmem [shape: f32[32,128], index: 0, kind: input, shape index: {}]
  %s1 = inlined_call_operand.hbm [shape: f32[384,512], index: 1, kind: input, shape index: {}]
  %s2 = inlined_call_operand.hbm [shape: f32[1,512], index: 2, kind: input, shape index: {}]
  %s3 = inlined_call_operand.hbm [shape: f32[1024,512], index: 3, kind: input, shape index: {}]
  %s4 = inlined_call_operand.hbm [shape: f32[1,512], index: 4, kind: input, shape index: {}]
  %s5 = inlined_call_operand.vmem [shape: f32[32,512], index: 5, kind: output, shape index: {}]
  %s6 = sld [smem:[#allocation0]]
  $region69: #{decoder_conv_block_apply.1} parent=0
    _
  %s8 = ssub.s32 1, %s6
  %s9 = scalar_select 0, %s8, %s6
  $region1: #{decoder_conv_block_apply.1} parent=0
    #allocation2 [shape = 'u8[786432]{0}', space=vmem, size = 0xc0000, scoped, tag = 'input window, operand 1, single buffered']
    #allocation3 [shape = 's32[2]{0}', space=sflag, size = 0x8, scoped, tag = 'scoped memory for decoder_conv_block_apply.1']
    #allocation4 [shape = 'u8[2048]{0}', space=vmem, size = 0x800, scoped, tag = 'input window, operand 2, single buffered']
    #allocation5 [shape = 's32[1]{0}', space=sflag, size = 0x4, scoped, tag = 'scoped memory for decoder_conv_block_apply.1']
    #allocation6 [shape = 'u8[2097152]{0}', space=vmem, size = 0x200000, scoped, tag = 'input window, operand 3, single buffered']
    #allocation7 [shape = 'u8[2048]{0}', space=vmem, size = 0x800, scoped, tag = 'input window, operand 4, single buffered']
    #allocation8 [shape = 's32[1]{0}', space=sflag, size = 0x4, scoped, tag = 'scoped memory for decoder_conv_block_apply.1']
    %10 = vsyncpa [#allocation3], 0
    %11 = vsyncpa [#allocation5], 0
    %12 = vsyncpa [#allocation8], 0
    loop: start=0, step=1, limit=4
    $region2: #{decoder_conv_block_apply.1} parent=1 // loop_pre_header
      _
    $region3: #{decoder_conv_block_apply.1} parent=1 // loop_header
      %s14 = sphi 0, %s18
      %p15 = scmp.ge.s32.totalorder %s14, 4
      %s24 = sphi 0, %s26
      %s27 = sphi 0, %s24
      %s28 = sphi 0, %s27
      %s44 = sphi 0, %s28
      %s48 = sphi 0, %s48
      %s50 = sphi 0, %s48
      %s51 = sphi 0, %s50
      %s65 = sphi 0, %s51
      %s69 = sphi 0, %s69
      %s71 = sphi 0, %s69
      %s72 = sphi 0, %s71
      %s86 = sphi 0, %s72
      %s90 = sphi 0, %s90
      %s92 = sphi 0, %s90
      %s93 = sphi 0, %s92
      %s107 = sphi 0, %s93
      %s111 = sphi 0, %s111
      %s113 = sphi 0, %s111
      %s114 = sphi 0, %s113
      %s128 = sphi 0, %s114
      %s134 = sphi 0, %s136
      %s137 = sphi 0, %s134
      %s138 = sphi 0, %s137
      %s154 = sphi 0, %s138
    $region4: #{decoder_conv_block_apply.1} parent=1 // loop_header_branch
      %17 = sbr.rel (%p15) target = $region8
    $region5: #{decoder_conv_block_apply.1} parent=1 // loop_body
      %s19 = ssub.s32 %s14, 1
      %s20 = ssub.s32 %s14, 2
      %s21 = sadd.s32 %s14, 1
      %s22 = ssub.s32 %s14, %s21
      %p23 = scmp.eq.s32.totalorder %s22, 0
      %s25 = sadd.s32 %s24, 1
      %s26 = scalar_select %p23, %s24, %s25
      %p29 = pneg %p23
      %p30 = scmp.eq.s32.totalorder %s14, 1
      %p31 = por %p29, %p30
      %p32 = scmp.ne.s32.totalorder %s24, %s27
      %p33 = scmp.eq.s32.totalorder %s14, 0
      %p34 = por %p32, %p33
      %p35 = scmp.ne.s32.totalorder %s24, %s27
      %p36 = scmp.eq.s32.totalorder %s19, 1
      %p37 = por %p35, %p36
      %p38 = scmp.ne.s32.totalorder %s27, %s28
      %p39 = scmp.eq.s32.totalorder %s19, 0
      %p40 = por %p38, %p39
      %p41 = scmp.ne.s32.totalorder %s27, %s28
      %p42 = scmp.eq.s32.totalorder %s20, 1
      %p43 = por %p41, %p42
      %p45 = scmp.ne.s32.totalorder %s28, %s44
      %p46 = scmp.eq.s32.totalorder %s20, 0
      %p47 = por %p45, %p46
      %s49 = sadd.s32 %s48, 1
      %p52 = scmp.eq.s32.totalorder %s14, 1
      %p53 = scmp.ne.s32.totalorder %s48, %s50
      %p54 = scmp.eq.s32.totalorder %s14, 0
      %p55 = por %p53, %p54
      %p56 = scmp.ne.s32.totalorder %s48, %s50
      %p57 = scmp.eq.s32.totalorder %s19, 1
      %p58 = por %p56, %p57
      %p59 = scmp.ne.s32.totalorder %s50, %s51
      %p60 = scmp.eq.s32.totalorder %s19, 0
      %p61 = por %p59, %p60
      %p62 = scmp.ne.s32.totalorder %s50, %s51
      %p63 = scmp.eq.s32.totalorder %s20, 1
      %p64 = por %p62, %p63
      %p66 = scmp.ne.s32.totalorder %s51, %s65
      %p67 = scmp.eq.s32.totalorder %s20, 0
      %p68 = por %p66, %p67
      %s70 = sadd.s32 %s69, 1
      %p73 = scmp.eq.s32.totalorder %s14, 1
      %p74 = scmp.ne.s32.totalorder %s69, %s71
      %p75 = scmp.eq.s32.totalorder %s14, 0
      %p76 = por %p74, %p75
      %p77 = scmp.ne.s32.totalorder %s69, %s71
      %p78 = scmp.eq.s32.totalorder %s19, 1
      %p79 = por %p77, %p78
      %p80 = scmp.ne.s32.totalorder %s71, %s72
      %p81 = scmp.eq.s32.totalorder %s19, 0
      %p82 = por %p80, %p81
      %p83 = scmp.ne.s32.totalorder %s71, %s72
      %p84 = scmp.eq.s32.totalorder %s20, 1
      %p85 = por %p83, %p84
      %p87 = scmp.ne.s32.totalorder %s72, %s86
      %p88 = scmp.eq.s32.totalorder %s20, 0
      %p89 = por %p87, %p88
      %s91 = sadd.s32 %s90, 1
      %p94 = scmp.eq.s32.totalorder %s14, 1
      %p95 = scmp.ne.s32.totalorder %s90, %s92
      %p96 = scmp.eq.s32.totalorder %s14, 0
      %p97 = por %p95, %p96
      %p98 = scmp.ne.s32.totalorder %s90, %s92
      %p99 = scmp.eq.s32.totalorder %s19, 1
      %p100 = por %p98, %p99
      %p101 = scmp.ne.s32.totalorder %s92, %s93
      %p102 = scmp.eq.s32.totalorder %s19, 0
      %p103 = por %p101, %p102
      %p104 = scmp.ne.s32.totalorder %s92, %s93
      %p105 = scmp.eq.s32.totalorder %s20, 1
      %p106 = por %p104, %p105
      %p108 = scmp.ne.s32.totalorder %s93, %s107
      %p109 = scmp.eq.s32.totalorder %s20, 0
      %p110 = por %p108, %p109
      %s112 = sadd.s32 %s111, 1
      %p115 = scmp.eq.s32.totalorder %s14, 1
      %p116 = scmp.ne.s32.totalorder %s111, %s113
      %p117 = scmp.eq.s32.totalorder %s14, 0
      %p118 = por %p116, %p117
      %p119 = scmp.ne.s32.totalorder %s111, %s113
      %p120 = scmp.eq.s32.totalorder %s19, 1
      %p121 = por %p119, %p120
      %p122 = scmp.ne.s32.totalorder %s113, %s114
      %p123 = scmp.eq.s32.totalorder %s19, 0
      %p124 = por %p122, %p123
      %p125 = scmp.ne.s32.totalorder %s113, %s114
      %p126 = scmp.eq.s32.totalorder %s20, 1
      %p127 = por %p125, %p126
      %p129 = scmp.ne.s32.totalorder %s114, %s128
      %p130 = scmp.eq.s32.totalorder %s20, 0
      %p131 = por %p129, %p130
      %s132 = ssub.s32 %s14, %s21
      %p133 = scmp.eq.s32.totalorder %s132, 0
      %s135 = sadd.s32 %s134, 1
      %s136 = scalar_select %p133, %s134, %s135
      %p139 = pneg %p133
      %p140 = scmp.eq.s32.totalorder %s14, 1
      %p141 = por %p139, %p140
      %p142 = scmp.ne.s32.totalorder %s134, %s137
      %p143 = scmp.eq.s32.totalorder %s14, 0
      %p144 = por %p142, %p143
      %p145 = scmp.ne.s32.totalorder %s134, %s137
      %p146 = scmp.eq.s32.totalorder %s19, 1
      %p147 = por %p145, %p146
      %p148 = scmp.ne.s32.totalorder %s137, %s138
      %p149 = scmp.eq.s32.totalorder %s19, 0
      %p150 = por %p148, %p149
      %p151 = scmp.ne.s32.totalorder %s137, %s138
      %p152 = scmp.eq.s32.totalorder %s20, 1
      %p153 = por %p151, %p152
      %p155 = scmp.ne.s32.totalorder %s138, %s154
      %p156 = scmp.eq.s32.totalorder %s20, 0
      %p157 = por %p155, %p156
      %p158 = scmp.le.s32.totalorder 1, %s14
      %p159 = scmp.lt.s32.totalorder %s14, 3
      %p160 = pnand %p158, %p159
      %p161 = pneg %p160
      // Predicated region
      $region9: #{decoder_conv_block_apply.1} parent=5 // pred_check
        _
      $region10: #{decoder_conv_block_apply.1} parent=5 // pred_check_branch
        %163 = sbr.rel (%p160) target = $region12
      $region11: #{decoder_conv_block_apply.1} parent=5 // pred_region
        %s164 = ssub.s32 %s14, 1
        // Predicated region
        $region13: #{decoder_conv_block_apply.1} parent=11 // pred_check
          %p165 = pneg %p61
        $region14: #{decoder_conv_block_apply.1} parent=11 // pred_check_branch
          %167 = sbr.rel (%p165) target = $region16
        $region15: #{decoder_conv_block_apply.1} parent=11 // pred_region
          %s169 = ssub.s32 24576, 24576
          %170 = vsyncadd [#allocation3], %s169
          %s171 = sshll.u32 [#allocation2], 4
          %s172 = int_to_ptr.vmem [resolvable:$true] %s171
          %177 = dma.hbm_to_vmem [thread:$0]  %s1, 24576, %s172, [#allocation3], 512, 512, 32
        $region16: #{decoder_conv_block_apply.1} parent=11 // pred_fallthru
          _
        // Predicated region
        $region17: #{decoder_conv_block_apply.1} parent=11 // pred_check
          %p178 = pneg %p82
        $region18: #{decoder_conv_block_apply.1} parent=11 // pred_check_branch
          %180 = sbr.rel (%p178) target = $region20
        $region19: #{decoder_conv_block_apply.1} parent=11 // pred_region
          %s182 = ssub.s32 64, 64
          %183 = vsyncadd [#allocation5], %s182
          %s185 = sshll.u32 [#allocation4], 4
          %s186 = int_to_ptr.vmem [resolvable:$true] %s185
          %188 = dma.hbm_to_vmem [thread:$0]  %s2, 64, %s186, [#allocation5]
        $region20: #{decoder_conv_block_apply.1} parent=11 // pred_fallthru
          _
        // Predicated region
        $region21: #{decoder_conv_block_apply.1} parent=11 // pred_check
          %p189 = pneg %p103
        $region22: #{decoder_conv_block_apply.1} parent=11 // pred_check_branch
          %191 = sbr.rel (%p189) target = $region24
        $region23: #{decoder_conv_block_apply.1} parent=11 // pred_region
          %s193 = ssub.s32 65536, 65536
          %194 = vsyncadd [#allocation5], %s193
          %s195 = sshll.u32 [#allocation6], 4
          %s196 = int_to_ptr.vmem [resolvable:$true] %s195
          %201 = dma.hbm_to_vmem [thread:$0]  %s3, 65536, %s196, [#allocation5], 512, 512, 32
        $region24: #{decoder_conv_block_apply.1} parent=11 // pred_fallthru
          _
        // Predicated region
        $region25: #{decoder_conv_block_apply.1} parent=11 // pred_check
          %p202 = pneg %p124
        $region26: #{decoder_conv_block_apply.1} parent=11 // pred_check_branch
          %204 = sbr.rel (%p202) target = $region28
        $region27: #{decoder_conv_block_apply.1} parent=11 // pred_region
          %s206 = ssub.s32 64, 64
          %207 = vsyncadd [#allocation8], %s206
          %s209 = sshll.u32 [#allocation7], 4
          %s210 = int_to_ptr.vmem [resolvable:$true] %s209
          %212 = dma.hbm_to_vmem [thread:$0]  %s4, 64, %s210, [#allocation8]
        $region28: #{decoder_conv_block_apply.1} parent=11 // pred_fallthru
          _
      $region12: #{decoder_conv_block_apply.1} parent=5 // pred_fallthru
        _
      %p213 = scmp.lt.s32.totalorder %s14, 2
      // Predicated region
      $region29: #{decoder_conv_block_apply.1} parent=5 // pred_check
        %p214 = pneg %p213
      $region30: #{decoder_conv_block_apply.1} parent=5 // pred_check_branch
        %216 = sbr.rel (%p214) target = $region32
      $region31: #{decoder_conv_block_apply.1} parent=5 // pred_region
        // Predicated region
        $region33: #{decoder_conv_block_apply.1} parent=31 // pred_check
          %p217 = pneg %p34
        $region34: #{decoder_conv_block_apply.1} parent=31 // pred_check_branch
          %219 = sbr.rel (%p217) target = $region36
        $region35: #{decoder_conv_block_apply.1} parent=31 // pred_region
          %s220 = smul.u32 2, %s14
          %p221 = scmp.lt.s32.totalorder %s220, 3
          %s222 = scalar_select %p221, %s220, 3
          %s223 = smul.addr %s222, 8
          %s224 = scalar_lea.vmem %s0, %s223
          %s225 = smul.u32 2, %s14
        $region36: #{decoder_conv_block_apply.1} parent=31 // pred_fallthru
          _
      $region32: #{decoder_conv_block_apply.1} parent=5 // pred_fallthru
        _
      %p226 = scmp.le.s32.totalorder 1, %s14
      %p227 = scmp.lt.s32.totalorder %s14, 3
      %p228 = pnand %p226, %p227
      %p229 = pneg %p228
      // Predicated region
      $region37: #{decoder_conv_block_apply.1} parent=5 // pred_check
        _
      $region38: #{decoder_conv_block_apply.1} parent=5 // pred_check_branch
        %231 = sbr.rel (%p228) target = $region40
      $region39: #{decoder_conv_block_apply.1} parent=5 // pred_region
        %s232 = ssub.s32 %s14, 1
        // Predicated region
        $region41: #{decoder_conv_block_apply.1} parent=39 // pred_check
          %p233 = pneg %p61
        $region42: #{decoder_conv_block_apply.1} parent=39 // pred_check_branch
          %235 = sbr.rel (%p233) target = $region44
        $region43: #{decoder_conv_block_apply.1} parent=39 // pred_region
          %236 = dma.done [#allocation3], 24576
        $region44: #{decoder_conv_block_apply.1} parent=39 // pred_fallthru
          _
        // Predicated region
        $region45: #{decoder_conv_block_apply.1} parent=39 // pred_check
          %p237 = pneg %p82
        $region46: #{decoder_conv_block_apply.1} parent=39 // pred_check_branch
          %239 = sbr.rel (%p237) target = $region48
        $region47: #{decoder_conv_block_apply.1} parent=39 // pred_region
          %240 = dma.done [#allocation5], 64
        $region48: #{decoder_conv_block_apply.1} parent=39 // pred_fallthru
          _
        // Predicated region
        $region49: #{decoder_conv_block_apply.1} parent=39 // pred_check
          %p241 = pneg %p103
        $region50: #{decoder_conv_block_apply.1} parent=39 // pred_check_branch
          %243 = sbr.rel (%p241) target = $region52
        $region51: #{decoder_conv_block_apply.1} parent=39 // pred_region
          %244 = dma.done [#allocation5], 65536
        $region52: #{decoder_conv_block_apply.1} parent=39 // pred_fallthru
          _
        // Predicated region
        $region53: #{decoder_conv_block_apply.1} parent=39 // pred_check
          %p245 = pneg %p124
        $region54: #{decoder_conv_block_apply.1} parent=39 // pred_check_branch
          %247 = sbr.rel (%p245) target = $region56
        $region55: #{decoder_conv_block_apply.1} parent=39 // pred_region
          %248 = dma.done [#allocation8], 64
        $region56: #{decoder_conv_block_apply.1} parent=39 // pred_fallthru
          _
        %s249 = smul.u32 2, %s19
        %p250 = scmp.lt.s32.totalorder %s249, 3
        %s251 = scalar_select %p250, %s249, 3
        %s252 = smul.addr %s251, 8
        %s253 = scalar_lea.vmem %s0, %s252
        %p254 = pneg %p40
        %p255 = pneg %p37
        %p256 = pneg %p61
        %p257 = pneg %p58
        %p258 = pneg %p82
        %p259 = pneg %p79
        %p260 = pneg %p103
        %p261 = pneg %p100
        %p262 = pneg %p124
        %p263 = pneg %p121
        %p264 = pneg %p150
        %p265 = pneg %p147
        %s266 = smul.u32 2, %s19
        %p267 = scmp.lt.s32.totalorder %s266, 3
        %s268 = scalar_select %p267, %s266, 3
        %s269 = smul.addr %s268, 4
        %s270 = smul.addr %s269, 8
        %s271 = scalar_lea.vmem %s5, %s270
        %s272 = smul.u32 2, %s19
        %p273 = scmp.lt.s32.totalorder %s272, 3
        %s274 = scalar_select %p273, %s272, 3
        %s275 = smul.addr %s274, 8
        %s276 = scalar_lea.vmem %s0, %s275
        %s277 = smul.u32 2, %s19
        %s278 = smul.u32 2, %s19
        %p279 = scmp.lt.s32.totalorder %s278, 3
        %s280 = scalar_select %p279, %s278, 3
        %s281 = smul.addr %s280, 4
        %s282 = smul.addr %s281, 8
        %s283 = scalar_lea.vmem %s5, %s282
        %s284 = smul.u32 2, %s19
        %v285 = vld [vmem:[%s276] sm:$0xff]
        %v286 = vld [vmem:[%s276 + $0x8] sm:$0xff]
        %v287 = vlaneseq
        %v288 = vshrl.u32 %v287, 7
        %v289 = vadd.s32 %v288, 8
        %vm290 = vcmp.lt.s32.totalorder %v288, 0
        %v291 = vsub.s32 0, %v288
        %v292 = vsel %vm290, %v291, %v288
        %v293 = vshrl.u32 %v292, 4
        %v294 = vand.u32 %v292, 15
        %v295 = vsub.s32 0, %v294
        %v296 = vsel %vm290, %v295, %v294
        %vm297 = vcmp.lt.s32.totalorder %v289, 0
        %v298 = vsub.s32 0, %v289
        %v299 = vsel %vm297, %v298, %v289
        %v300 = vshrl.u32 %v299, 4
        %v301 = vand.u32 %v299, 15
        %v302 = vsub.s32 0, %v301
        %v303 = vsel %vm297, %v302, %v301
        %vm304 = vcmp.ne.s32.totalorder %v296, 0
        %vm305 = vcmp.ne.s32.totalorder %v303, 0
        %vm306 = vcmp.lt.s32.totalorder %v296, 0
        %vm307 = vcmp.lt.s32.totalorder %v303, 0
        %vm308 = vmand %vm306, %vm304
        %vm309 = vmand %vm307, %vm305
        %v310 = vadd.s32 %v296, 16
        %v311 = vadd.s32 %v303, 16
        %v312 = vsel %vm308, %v310, %v296
        %v313 = vsel %vm309, %v311, %v303
        %vm314 = vcmp.eq.s32.totalorder %v312, 0
        %vm315 = vcmp.eq.s32.totalorder %v313, 0
        %vm316 = vcmp.eq.s32.totalorder %v312, 15
        %vm317 = vcmp.eq.s32.totalorder %v313, 15
        %v318 = vrot.slane %v285, 7
        %v319 = vrot.slane %v286, 7
        %vm320 = vcmp.lt.s32.totalorder %v288, 1
        %v321 = vsel %vm320, %v318, %v319
        %v322 = vsel %vm320, %v319, %v318
        %v323 = vsel %vm314, 0.0, %v322
        %v324 = vsel %vm315, 0.0, %v321
        %v325 = vrot.slane %v285, 1
        %v326 = vrot.slane %v286, 1
        %vm327 = vcmp.lt.s32.totalorder %v288, 7
        %v328 = vsel %vm327, %v325, %v326
        %v329 = vsel %vm327, %v326, %v325
        %v330 = vsel %vm316, 0.0, %v328
        %v331 = vsel %vm317, 0.0, %v329
        %v332 = vld [vmem:[#allocation2] sm:$0xff]
        %v333 = vld [vmem:[#allocation2 + $0x8] sm:$0xff]
        %v334 = vld [vmem:[#allocation2 + $0x10] sm:$0xff]
        %v335 = vld [vmem:[#allocation2 + $0x18] sm:$0xff]
        %v336 = vld [vmem:[#allocation2 + $0x20] sm:$0xff]
        %v337 = vld [vmem:[#allocation2 + $0x28] sm:$0xff]
        %v338 = vld [vmem:[#allocation2 + $0x30] sm:$0xff]
        %v339 = vld [vmem:[#allocation2 + $0x38] sm:$0xff]
        %v340 = vld [vmem:[#allocation2 + $0x40] sm:$0xff]
        %v341 = vld [vmem:[#allocation2 + $0x48] sm:$0xff]
        %v342 = vld [vmem:[#allocation2 + $0x50] sm:$0xff]
        %v343 = vld [vmem:[#allocation2 + $0x58] sm:$0xff]
        %v344 = vld [vmem:[#allocation2 + $0x60] sm:$0xff]
        %v345 = vld [vmem:[#allocation2 + $0x68] sm:$0xff]
        %v346 = vld [vmem:[#allocation2 + $0x70] sm:$0xff]
        %v347 = vld [vmem:[#allocation2 + $0x78] sm:$0xff]
        %v348 = vld [vmem:[#allocation2 + $0x80] sm:$0xff]
        %v349 = vld [vmem:[#allocation2 + $0x88] sm:$0xff]
        %v350 = vld [vmem:[#allocation2 + $0x90] sm:$0xff]
        %v351 = vld [vmem:[#allocation2 + $0x98] sm:$0xff]
        %v352 = vld [vmem:[#allocation2 + $0xa0] sm:$0xff]
        %v353 = vld [vmem:[#allocation2 + $0xa8] sm:$0xff]
        %v354 = vld [vmem:[#allocation2 + $0xb0] sm:$0xff]
        %v355 = vld [vmem:[#allocation2 + $0xb8] sm:$0xff]
        %v356 = vld [vmem:[#allocation2 + $0xc0] sm:$0xff]
        %v357 = vld [vmem:[#allocation2 + $0xc8] sm:$0xff]
        %v358 = vld [vmem:[#allocation2 + $0xd0] sm:$0xff]
        %v359 = vld [vmem:[#allocation2 + $0xd8] sm:$0xff]
        %v360 = vld [vmem:[#allocation2 + $0xe0] sm:$0xff]
        %v361 = vld [vmem:[#allocation2 + $0xe8] sm:$0xff]
        %v362 = vld [vmem:[#allocation2 + $0xf0] sm:$0xff]
        %v363 = vld [vmem:[#allocation2 + $0xf8] sm:$0xff]
        %v364 = vld [vmem:[#allocation2 + $0x100] sm:$0xff]
        %v365 = vld [vmem:[#allocation2 + $0x108] sm:$0xff]
        %v366 = vld [vmem:[#allocation2 + $0x110] sm:$0xff]
        %v367 = vld [vmem:[#allocation2 + $0x118] sm:$0xff]
        %v368 = vld [vmem:[#allocation2 + $0x120] sm:$0xff]
        %v369 = vld [vmem:[#allocation2 + $0x128] sm:$0xff]
        %v370 = vld [vmem:[#allocation2 + $0x130] sm:$0xff]
        %v371 = vld [vmem:[#allocation2 + $0x138] sm:$0xff]
        %v372 = vld [vmem:[#allocation2 + $0x140] sm:$0xff]
        %v373 = vld [vmem:[#allocation2 + $0x148] sm:$0xff]
        %v374 = vld [vmem:[#allocation2 + $0x150] sm:$0xff]
        %v375 = vld [vmem:[#allocation2 + $0x158] sm:$0xff]
        %v376 = vld [vmem:[#allocation2 + $0x160] sm:$0xff]
        %v377 = vld [vmem:[#allocation2 + $0x168] sm:$0xff]
        %v378 = vld [vmem:[#allocation2 + $0x170] sm:$0xff]
        %v379 = vld [vmem:[#allocation2 + $0x178] sm:$0xff]
        %v380 = vld [vmem:[#allocation2 + $0x180] sm:$0xff]
        %v381 = vld [vmem:[#allocation2 + $0x188] sm:$0xff]
        %v382 = vld [vmem:[#allocation2 + $0x190] sm:$0xff]
        %v383 = vld [vmem:[#allocation2 + $0x198] sm:$0xff]
        %v384 = vld [vmem:[#allocation2 + $0x1a0] sm:$0xff]
        %v385 = vld [vmem:[#allocation2 + $0x1a8] sm:$0xff]
        %v386 = vld [vmem:[#allocation2 + $0x1b0] sm:$0xff]
        %v387 = vld [vmem:[#allocation2 + $0x1b8] sm:$0xff]
        %v388 = vld [vmem:[#allocation2 + $0x1c0] sm:$0xff]
        %v389 = vld [vmem:[#allocation2 + $0x1c8] sm:$0xff]
        %v390 = vld [vmem:[#allocation2 + $0x1d0] sm:$0xff]
        %v391 = vld [vmem:[#allocation2 + $0x1d8] sm:$0xff]
        %v392 = vld [vmem:[#allocation2 + $0x1e0] sm:$0xff]
        %v393 = vld [vmem:[#allocation2 + $0x1e8] sm:$0xff]
        %v394 = vld [vmem:[#allocation2 + $0x1f0] sm:$0xff]
        %v395 = vld [vmem:[#allocation2 + $0x1f8] sm:$0xff]
        %v396 = vld [vmem:[#allocation2 + $0x200] sm:$0xff]
        %v397 = vld [vmem:[#allocation2 + $0x208] sm:$0xff]
        %v398 = vld [vmem:[#allocation2 + $0x210] sm:$0xff]
        %v399 = vld [vmem:[#allocation2 + $0x218] sm:$0xff]
        %v400 = vld [vmem:[#allocation2 + $0x220] sm:$0xff]
        %v401 = vld [vmem:[#allocation2 + $0x228] sm:$0xff]
        %v402 = vld [vmem:[#allocation2 + $0x230] sm:$0xff]
        %v403 = vld [vmem:[#allocation2 + $0x238] sm:$0xff]
        %v404 = vld [vmem:[#allocation2 + $0x240] sm:$0xff]
        %v405 = vld [vmem:[#allocation2 + $0x248] sm:$0xff]
        %v406 = vld [vmem:[#allocation2 + $0x250] sm:$0xff]
        %v407 = vld [vmem:[#allocation2 + $0x258] sm:$0xff]
        %v408 = vld [vmem:[#allocation2 + $0x260] sm:$0xff]
        %v409 = vld [vmem:[#allocation2 + $0x268] sm:$0xff]
        %v410 = vld [vmem:[#allocation2 + $0x270] sm:$0xff]
        %v411 = vld [vmem:[#allocation2 + $0x278] sm:$0xff]
        %v412 = vld [vmem:[#allocation2 + $0x280] sm:$0xff]
        %v413 = vld [vmem:[#allocation2 + $0x288] sm:$0xff]
        %v414 = vld [vmem:[#allocation2 + $0x290] sm:$0xff]
        %v415 = vld [vmem:[#allocation2 + $0x298] sm:$0xff]
        %v416 = vld [vmem:[#allocation2 + $0x2a0] sm:$0xff]
        %v417 = vld [vmem:[#allocation2 + $0x2a8] sm:$0xff]
        %v418 = vld [vmem:[#allocation2 + $0x2b0] sm:$0xff]
        %v419 = vld [vmem:[#allocation2 + $0x2b8] sm:$0xff]
        %v420 = vld [vmem:[#allocation2 + $0x2c0] sm:$0xff]
        %v421 = vld [vmem:[#allocation2 + $0x2c8] sm:$0xff]
        %v422 = vld [vmem:[#allocation2 + $0x2d0] sm:$0xff]
        %v423 = vld [vmem:[#allocation2 + $0x2d8] sm:$0xff]
        %v424 = vld [vmem:[#allocation2 + $0x2e0] sm:$0xff]
        %v425 = vld [vmem:[#allocation2 + $0x2e8] sm:$0xff]
        %v426 = vld [vmem:[#allocation2 + $0x2f0] sm:$0xff]
        %v427 = vld [vmem:[#allocation2 + $0x2f8] sm:$0xff]
        %v428 = vld [vmem:[#allocation2 + $0x300] sm:$0xff]
        %v429 = vld [vmem:[#allocation2 + $0x308] sm:$0xff]
        %v430 = vld [vmem:[#allocation2 + $0x310] sm:$0xff]
        %v431 = vld [vmem:[#allocation2 + $0x318] sm:$0xff]
        %v432 = vld [vmem:[#allocation2 + $0x320] sm:$0xff]
        %v433 = vld [vmem:[#allocation2 + $0x328] sm:$0xff]
        %v434 = vld [vmem:[#allocation2 + $0x330] sm:$0xff]
        %v435 = vld [vmem:[#allocation2 + $0x338] sm:$0xff]
        %v436 = vld [vmem:[#allocation2 + $0x340] sm:$0xff]
        %v437 = vld [vmem:[#allocation2 + $0x348] sm:$0xff]
        %v438 = vld [vmem:[#allocation2 + $0x350] sm:$0xff]
        %v439 = vld [vmem:[#allocation2 + $0x358] sm:$0xff]
        %v440 = vld [vmem:[#allocation2 + $0x360] sm:$0xff]
        %v441 = vld [vmem:[#allocation2 + $0x368] sm:$0xff]
        %v442 = vld [vmem:[#allocation2 + $0x370] sm:$0xff]
        %v443 = vld [vmem:[#allocation2 + $0x378] sm:$0xff]
        %v444 = vld [vmem:[#allocation2 + $0x380] sm:$0xff]
        %v445 = vld [vmem:[#allocation2 + $0x388] sm:$0xff]
        %v446 = vld [vmem:[#allocation2 + $0x390] sm:$0xff]
        %v447 = vld [vmem:[#allocation2 + $0x398] sm:$0xff]
        %v448 = vld [vmem:[#allocation2 + $0x3a0] sm:$0xff]
        %v449 = vld [vmem:[#allocation2 + $0x3a8] sm:$0xff]
        %v450 = vld [vmem:[#allocation2 + $0x3b0] sm:$0xff]
        %v451 = vld [vmem:[#allocation2 + $0x3b8] sm:$0xff]
        %v452 = vld [vmem:[#allocation2 + $0x3c0] sm:$0xff]
        %v453 = vld [vmem:[#allocation2 + $0x3c8] sm:$0xff]
        %v454 = vld [vmem:[#allocation2 + $0x3d0] sm:$0xff]
        %v455 = vld [vmem:[#allocation2 + $0x3d8] sm:$0xff]
        %v456 = vld [vmem:[#allocation2 + $0x3e0] sm:$0xff]
        %v457 = vld [vmem:[#allocation2 + $0x3e8] sm:$0xff]
        %v458 = vld [vmem:[#allocation2 + $0x3f0] sm:$0xff]
        %v459 = vld [vmem:[#allocation2 + $0x3f8] sm:$0xff]
        %v460 = vld [vmem:[#allocation2 + $0x400] sm:$0xff]
        %v461 = vld [vmem:[#allocation2 + $0x408] sm:$0xff]
        %v462 = vld [vmem:[#allocation2 + $0x410] sm:$0xff]
        %v463 = vld [vmem:[#allocation2 + $0x418] sm:$0xff]
        %v464 = vld [vmem:[#allocation2 + $0x420] sm:$0xff]
        %v465 = vld [vmem:[#allocation2 + $0x428] sm:$0xff]
        %v466 = vld [vmem:[#allocation2 + $0x430] sm:$0xff]
        %v467 = vld [vmem:[#allocation2 + $0x438] sm:$0xff]
        %v468 = vld [vmem:[#allocation2 + $0x440] sm:$0xff]
        %v469 = vld [vmem:[#allocation2 + $0x448] sm:$0xff]
        %v470 = vld [vmem:[#allocation2 + $0x450] sm:$0xff]
        %v471 = vld [vmem:[#allocation2 + $0x458] sm:$0xff]
        %v472 = vld [vmem:[#allocation2 + $0x460] sm:$0xff]
        %v473 = vld [vmem:[#allocation2 + $0x468] sm:$0xff]
        %v474 = vld [vmem:[#allocation2 + $0x470] sm:$0xff]
        %v475 = vld [vmem:[#allocation2 + $0x478] sm:$0xff]
        %v476 = vld [vmem:[#allocation2 + $0x480] sm:$0xff]
        %v477 = vld [vmem:[#allocation2 + $0x488] sm:$0xff]
        %v478 = vld [vmem:[#allocation2 + $0x490] sm:$0xff]
        %v479 = vld [vmem:[#allocation2 + $0x498] sm:$0xff]
        %v480 = vld [vmem:[#allocation2 + $0x4a0] sm:$0xff]
        %v481 = vld [vmem:[#allocation2 + $0x4a8] sm:$0xff]
        %v482 = vld [vmem:[#allocation2 + $0x4b0] sm:$0xff]
        %v483 = vld [vmem:[#allocation2 + $0x4b8] sm:$0xff]
        %v484 = vld [vmem:[#allocation2 + $0x4c0] sm:$0xff]
        %v485 = vld [vmem:[#allocation2 + $0x4c8] sm:$0xff]
        %v486 = vld [vmem:[#allocation2 + $0x4d0] sm:$0xff]
        %v487 = vld [vmem:[#allocation2 + $0x4d8] sm:$0xff]
        %v488 = vld [vmem:[#allocation2 + $0x4e0] sm:$0xff]
        %v489 = vld [vmem:[#allocation2 + $0x4e8] sm:$0xff]
        %v490 = vld [vmem:[#allocation2 + $0x4f0] sm:$0xff]
        %v491 = vld [vmem:[#allocation2 + $0x4f8] sm:$0xff]
        %v492 = vld [vmem:[#allocation2 + $0x500] sm:$0xff]
        %v493 = vld [vmem:[#allocation2 + $0x508] sm:$0xff]
        %v494 = vld [vmem:[#allocation2 + $0x510] sm:$0xff]
        %v495 = vld [vmem:[#allocation2 + $0x518] sm:$0xff]
        %v496 = vld [vmem:[#allocation2 + $0x520] sm:$0xff]
        %v497 = vld [vmem:[#allocation2 + $0x528] sm:$0xff]
        %v498 = vld [vmem:[#allocation2 + $0x530] sm:$0xff]
        %v499 = vld [vmem:[#allocation2 + $0x538] sm:$0xff]
        %v500 = vld [vmem:[#allocation2 + $0x540] sm:$0xff]
        %v501 = vld [vmem:[#allocation2 + $0x548] sm:$0xff]
        %v502 = vld [vmem:[#allocation2 + $0x550] sm:$0xff]
        %v503 = vld [vmem:[#allocation2 + $0x558] sm:$0xff]
        %v504 = vld [vmem:[#allocation2 + $0x560] sm:$0xff]
        %v505 = vld [vmem:[#allocation2 + $0x568] sm:$0xff]
        %v506 = vld [vmem:[#allocation2 + $0x570] sm:$0xff]
        %v507 = vld [vmem:[#allocation2 + $0x578] sm:$0xff]
        %v508 = vld [vmem:[#allocation2 + $0x580] sm:$0xff]
        %v509 = vld [vmem:[#allocation2 + $0x588] sm:$0xff]
        %v510 = vld [vmem:[#allocation2 + $0x590] sm:$0xff]
        %v511 = vld [vmem:[#allocation2 + $0x598] sm:$0xff]
        %v512 = vld [vmem:[#allocation2 + $0x5a0] sm:$0xff]
        %v513 = vld [vmem:[#allocation2 + $0x5a8] sm:$0xff]
        %v514 = vld [vmem:[#allocation2 + $0x5b0] sm:$0xff]
        %v515 = vld [vmem:[#allocation2 + $0x5b8] sm:$0xff]
        %v516 = vld [vmem:[#allocation2 + $0x5c0] sm:$0xff]
        %v517 = vld [vmem:[#allocation2 + $0x5c8] sm:$0xff]
        %v518 = vld [vmem:[#allocation2 + $0x5d0] sm:$0xff]
        %v519 = vld [vmem:[#allocation2 + $0x5d8] sm:$0xff]
        %v520 = vld [vmem:[#allocation2 + $0x5e0] sm:$0xff]
        %v521 = vld [vmem:[#allocation2 + $0x5e8] sm:$0xff]
        %v522 = vld [vmem:[#allocation2 + $0x5f0] sm:$0xff]
        %v523 = vld [vmem:[#allocation2 + $0x5f8] sm:$0xff]
        %v524 = vld [vmem:[#allocation4] sm:$0xf]
        %v526 = vlaneseq
        %v527 = vshrl.u32 %v526, 7
        %v528 = vsub.s32 0, %v527
        %v529 = vrot.slane %v524, %v528
        %v530 = vlaneseq
        %v531 = vshrl.u32 %v530, 7
        %v532 = vsub.s32 1, %v531
        %v533 = vrot.slane %v524, %v532
        %v534 = vlaneseq
        %v535 = vshrl.u32 %v534, 7
        %v536 = vsub.s32 2, %v535
        %v537 = vrot.slane %v524, %v536
        %v538 = vlaneseq
        %v539 = vshrl.u32 %v538, 7
        %v540 = vsub.s32 3, %v539
        %v541 = vrot.slane %v524, %v540
        %546 = vmatprep.subr.mxu0 %v393
        %547 = vmatpush1.msra.mxu0 %v392
        %548 = vmatprep.subr.mxu0 %v389
        %549 = vmatpush1.msra.mxu0 %v388
        %550 = vmatprep.subr.mxu0 %v385
        %551 = vmatpush1.msra.mxu0 %v384
        %552 = vmatprep.subr.mxu0 %v381
        %553 = vmatpush1.msra.mxu0 %v380
        %554 = vmatprep.subr.mxu0 %v377
        %555 = vmatpush1.msra.mxu0 %v376
        %556 = vmatprep.subr.mxu0 %v373
        %557 = vmatpush1.msra.mxu0 %v372
        %558 = vmatprep.subr.mxu0 %v369
        %559 = vmatpush1.msra.mxu0 %v368
        %560 = vmatprep.subr.mxu0 %v365
        %561 = vmatpush1.msra.mxu0 %v364
        %562 = vmatprep.subr.mxu0 %v361
        %563 = vmatpush1.msra.mxu0 %v360
        %564 = vmatprep.subr.mxu0 %v357
        %565 = vmatpush1.msra.mxu0 %v356
        %566 = vmatprep.subr.mxu0 %v353
        %567 = vmatpush1.msra.mxu0 %v352
        %568 = vmatprep.subr.mxu0 %v349
        %569 = vmatpush1.msra.mxu0 %v348
        %570 = vmatprep.subr.mxu0 %v345
        %571 = vmatpush1.msra.mxu0 %v344
        %572 = vmatprep.subr.mxu0 %v341
        %573 = vmatpush1.msra.mxu0 %v340
        %574 = vmatprep.subr.mxu0 %v337
        %575 = vmatpush1.msra.mxu0 %v336
        %576 = vmatprep.subr.mxu0 %v333
        %577 = vmatpush1.msra.mxu0 %v332
        %578 = vmatprep.subr.mxu0 %v457
        %579 = vmatpush2.msra.mxu0 %v456
        %580 = vmatprep.subr.mxu0 %v453
        %581 = vmatpush2.msra.mxu0 %v452
        %582 = vmatprep.subr.mxu0 %v449
        %583 = vmatpush2.msra.mxu0 %v448
        %584 = vmatprep.subr.mxu0 %v445
        %585 = vmatpush2.msra.mxu0 %v444
        %586 = vmatprep.subr.mxu0 %v441
        %587 = vmatpush2.msra.mxu0 %v440
        %588 = vmatprep.subr.mxu0 %v437
        %589 = vmatpush2.msra.mxu0 %v436
        %590 = vmatprep.subr.mxu0 %v433
        %591 = vmatpush2.msra.mxu0 %v432
        %592 = vmatprep.subr.mxu0 %v429
        %593 = vmatpush2.msra.mxu0 %v428
        %594 = vmatprep.subr.mxu0 %v425
        %595 = vmatpush2.msra.mxu0 %v424
        %596 = vmatprep.subr.mxu0 %v421
        %597 = vmatpush2.msra.mxu0 %v420
        %598 = vmatprep.subr.mxu0 %v417
        %599 = vmatpush2.msra.mxu0 %v416
        %600 = vmatprep.subr.mxu0 %v413
        %601 = vmatpush2.msra.mxu0 %v412
        %602 = vmatprep.subr.mxu0 %v409
        %603 = vmatpush2.msra.mxu0 %v408
        %604 = vmatprep.subr.mxu0 %v405
        %605 = vmatpush2.msra.mxu0 %v404
        %606 = vmatprep.subr.mxu0 %v401
        %607 = vmatpush2.msra.mxu0 %v400
        %608 = vmatprep.subr.mxu0 %v397
        %609 = vmatpush2.msra.mxu0 %v396
        %610 = vmatprep.mubr.f32.mxu0 %v285
        %611 = vmatmul.mubr.f32.gmra.mxu0 %v323
        %v612 = vpop.f32.mrf.mxu0
        %v613 = vadd.f32 %v529, %v612
        %v614 = vpop.f32.mrf.mxu0
        %v615 = vadd.f32 %v533, %v614
        %616 = vmatprep.mubr.f32.mxu0 %v286
        %617 = vmatmul.mubr.f32.gmra.mxu0 %v324
        %v618 = vpop.f32.mrf.mxu0
        %v619 = vadd.f32 %v529, %v618
        %v620 = vpop.f32.mrf.mxu0
        %v621 = vadd.f32 %v533, %v620
        %622 = vdwg.mxu0
        %623 = vmatprep.subr.mxu0 %v521
        %624 = vmatpush1.msra.mxu0 %v520
        %625 = vmatprep.subr.mxu0 %v517
        %626 = vmatpush1.msra.mxu0 %v516
        %627 = vmatprep.subr.mxu0 %v513
        %628 = vmatpush1.msra.mxu0 %v512
        %629 = vmatprep.subr.mxu0 %v509
        %630 = vmatpush1.msra.mxu0 %v508
        %631 = vmatprep.subr.mxu0 %v505
        %632 = vmatpush1.msra.mxu0 %v504
        %633 = vmatprep.subr.mxu0 %v501
        %634 = vmatpush1.msra.mxu0 %v500
        %635 = vmatprep.subr.mxu0 %v497
        %636 = vmatpush1.msra.mxu0 %v496
        %637 = vmatprep.subr.mxu0 %v493
        %638 = vmatpush1.msra.mxu0 %v492
        %639 = vmatprep.subr.mxu0 %v489
        %640 = vmatpush1.msra.mxu0 %v488
        %641 = vmatprep.subr.mxu0 %v485
        %642 = vmatpush1.msra.mxu0 %v484
        %643 = vmatprep.subr.mxu0 %v481
        %644 = vmatpush1.msra.mxu0 %v480
        %645 = vmatprep.subr.mxu0 %v477
        %646 = vmatpush1.msra.mxu0 %v476
        %647 = vmatprep.subr.mxu0 %v473
        %648 = vmatpush1.msra.mxu0 %v472
        %649 = vmatprep.subr.mxu0 %v469
        %650 = vmatpush1.msra.mxu0 %v468
        %651 = vmatprep.subr.mxu0 %v465
        %652 = vmatpush1.msra.mxu0 %v464
        %653 = vmatprep.subr.mxu0 %v461
        %654 = vmatpush1.msra.mxu0 %v460
        %655 = vmatprep.subr.mxu0 0.0
        %656 = vmatpush2.msra.mxu0 0.0
        %657 = vmatprep.subr.mxu0 0.0
        %658 = vmatpush2.msra.mxu0 0.0
        %659 = vmatprep.subr.mxu0 0.0
        %660 = vmatpush2.msra.mxu0 0.0
        %661 = vmatprep.subr.mxu0 0.0
        %662 = vmatpush2.msra.mxu0 0.0
        %663 = vmatprep.subr.mxu0 0.0
        %664 = vmatpush2.msra.mxu0 0.0
        %665 = vmatprep.subr.mxu0 0.0
        %666 = vmatpush2.msra.mxu0 0.0
        %667 = vmatprep.subr.mxu0 0.0
        %668 = vmatpush2.msra.mxu0 0.0
        %669 = vmatprep.subr.mxu0 0.0
        %670 = vmatpush2.msra.mxu0 0.0
        %671 = vmatprep.subr.mxu0 0.0
        %672 = vmatpush2.msra.mxu0 0.0
        %673 = vmatprep.subr.mxu0 0.0
        %674 = vmatpush2.msra.mxu0 0.0
        %675 = vmatprep.subr.mxu0 0.0
        %676 = vmatpush2.msra.mxu0 0.0
        %677 = vmatprep.subr.mxu0 0.0
        %678 = vmatpush2.msra.mxu0 0.0
        %679 = vmatprep.subr.mxu0 0.0
        %680 = vmatpush2.msra.mxu0 0.0
        %681 = vmatprep.subr.mxu0 0.0
        %682 = vmatpush2.msra.mxu0 0.0
        %683 = vmatprep.subr.mxu0 0.0
        %684 = vmatpush2.msra.mxu0 0.0
        %685 = vmatprep.subr.mxu0 0.0
        %686 = vmatpush2.msra.mxu0 0.0
        %687 = vmatprep.mubr.f32.mxu0 0.0
        %688 = vmatmul.mubr.f32.gmra.mxu0 %v330
        %v689 = vpop.f32.mrf.mxu0
        %v690 = vadd.f32 %v613, %v689
        %v691 = vpop.f32.mrf.mxu0
        %v692 = vadd.f32 %v615, %v691
        %693 = vmatprep.mubr.f32.mxu0 0.0
        %694 = vmatmul.mubr.f32.gmra.mxu0 %v331
        %v695 = vpop.f32.mrf.mxu0
        %v696 = vadd.f32 %v619, %v695
        %v697 = vpop.f32.mrf.mxu0
        %v698 = vadd.f32 %v621, %v697
        %699 = vdwg.mxu0
        %700 = vmatprep.subr.mxu0 %v395
        %701 = vmatpush1.msra.mxu0 %v394
        %702 = vmatprep.subr.mxu0 %v391
        %703 = vmatpush1.msra.mxu0 %v390
        %704 = vmatprep.subr.mxu0 %v387
        %705 = vmatpush1.msra.mxu0 %v386
        %706 = vmatprep.subr.mxu0 %v383
        %707 = vmatpush1.msra.mxu0 %v382
        %708 = vmatprep.subr.mxu0 %v379
        %709 = vmatpush1.msra.mxu0 %v378
        %710 = vmatprep.subr.mxu0 %v375
        %711 = vmatpush1.msra.mxu0 %v374
        %712 = vmatprep.subr.mxu0 %v371
        %713 = vmatpush1.msra.mxu0 %v370
        %714 = vmatprep.subr.mxu0 %v367
        %715 = vmatpush1.msra.mxu0 %v366
        %716 = vmatprep.subr.mxu0 %v363
        %717 = vmatpush1.msra.mxu0 %v362
        %718 = vmatprep.subr.mxu0 %v359
        %719 = vmatpush1.msra.mxu0 %v358
        %720 = vmatprep.subr.mxu0 %v355
        %721 = vmatpush1.msra.mxu0 %v354
        %722 = vmatprep.subr.mxu0 %v351
        %723 = vmatpush1.msra.mxu0 %v350
        %724 = vmatprep.subr.mxu0 %v347
        %725 = vmatpush1.msra.mxu0 %v346
        %726 = vmatprep.subr.mxu0 %v343
        %727 = vmatpush1.msra.mxu0 %v342
        %728 = vmatprep.subr.mxu0 %v339
        %729 = vmatpush1.msra.mxu0 %v338
        %730 = vmatprep.subr.mxu0 %v335
        %731 = vmatpush1.msra.mxu0 %v334
        %732 = vmatprep.subr.mxu0 %v459
        %733 = vmatpush2.msra.mxu0 %v458
        %734 = vmatprep.subr.mxu0 %v455
        %735 = vmatpush2.msra.mxu0 %v454
        %736 = vmatprep.subr.mxu0 %v451
        %737 = vmatpush2.msra.mxu0 %v450
        %738 = vmatprep.subr.mxu0 %v447
        %739 = vmatpush2.msra.mxu0 %v446
        %740 = vmatprep.subr.mxu0 %v443
        %741 = vmatpush2.msra.mxu0 %v442
        %742 = vmatprep.subr.mxu0 %v439
        %743 = vmatpush2.msra.mxu0 %v438
        %744 = vmatprep.subr.mxu0 %v435
        %745 = vmatpush2.msra.mxu0 %v434
        %746 = vmatprep.subr.mxu0 %v431
        %747 = vmatpush2.msra.mxu0 %v430
        %748 = vmatprep.subr.mxu0 %v427
        %749 = vmatpush2.msra.mxu0 %v426
        %750 = vmatprep.subr.mxu0 %v423
        %751 = vmatpush2.msra.mxu0 %v422
        %752 = vmatprep.subr.mxu0 %v419
        %753 = vmatpush2.msra.mxu0 %v418
        %754 = vmatprep.subr.mxu0 %v415
        %755 = vmatpush2.msra.mxu0 %v414
        %756 = vmatprep.subr.mxu0 %v411
        %757 = vmatpush2.msra.mxu0 %v410
        %758 = vmatprep.subr.mxu0 %v407
        %759 = vmatpush2.msra.mxu0 %v406
        %760 = vmatprep.subr.mxu0 %v403
        %761 = vmatpush2.msra.mxu0 %v402
        %762 = vmatprep.subr.mxu0 %v399
        %763 = vmatpush2.msra.mxu0 %v398
        %764 = vmatprep.mubr.f32.mxu0 %v285
        %765 = vmatmul.mubr.f32.gmra.mxu0 %v323
        %v766 = vpop.f32.mrf.mxu0
        %v767 = vadd.f32 %v537, %v766
        %v768 = vpop.f32.mrf.mxu0
        %v769 = vadd.f32 %v541, %v768
        %770 = vmatprep.mubr.f32.mxu0 %v286
        %771 = vmatmul.mubr.f32.gmra.mxu0 %v324
        %v772 = vpop.f32.mrf.mxu0
        %v773 = vadd.f32 %v537, %v772
        %v774 = vpop.f32.mrf.mxu0
        %v775 = vadd.f32 %v541, %v774
        %776 = vdwg.mxu0
        %777 = vmatprep.subr.mxu0 %v523
        %778 = vmatpush1.msra.mxu0 %v522
        %779 = vmatprep.subr.mxu0 %v519
        %780 = vmatpush1.msra.mxu0 %v518
        %781 = vmatprep.subr.mxu0 %v515
        %782 = vmatpush1.msra.mxu0 %v514
        %783 = vmatprep.subr.mxu0 %v511
        %784 = vmatpush1.msra.mxu0 %v510
        %785 = vmatprep.subr.mxu0 %v507
        %786 = vmatpush1.msra.mxu0 %v506
        %787 = vmatprep.subr.mxu0 %v503
        %788 = vmatpush1.msra.mxu0 %v502
        %789 = vmatprep.subr.mxu0 %v499
        %790 = vmatpush1.msra.mxu0 %v498
        %791 = vmatprep.subr.mxu0 %v495
        %792 = vmatpush1.msra.mxu0 %v494
        %793 = vmatprep.subr.mxu0 %v491
        %794 = vmatpush1.msra.mxu0 %v490
        %795 = vmatprep.subr.mxu0 %v487
        %796 = vmatpush1.msra.mxu0 %v486
        %797 = vmatprep.subr.mxu0 %v483
        %798 = vmatpush1.msra.mxu0 %v482
        %799 = vmatprep.subr.mxu0 %v479
        %800 = vmatpush1.msra.mxu0 %v478
        %801 = vmatprep.subr.mxu0 %v475
        %802 = vmatpush1.msra.mxu0 %v474
        %803 = vmatprep.subr.mxu0 %v471
        %804 = vmatpush1.msra.mxu0 %v470
        %805 = vmatprep.subr.mxu0 %v467
        %806 = vmatpush1.msra.mxu0 %v466
        %807 = vmatprep.subr.mxu0 %v463
        %808 = vmatpush1.msra.mxu0 %v462
        %809 = vmatprep.subr.mxu0 0.0
        %810 = vmatpush2.msra.mxu0 0.0
        %811 = vmatprep.subr.mxu0 0.0
        %812 = vmatpush2.msra.mxu0 0.0
        %813 = vmatprep.subr.mxu0 0.0
        %814 = vmatpush2.msra.mxu0 0.0
        %815 = vmatprep.subr.mxu0 0.0
        %816 = vmatpush2.msra.mxu0 0.0
        %817 = vmatprep.subr.mxu0 0.0
        %818 = vmatpush2.msra.mxu0 0.0
        %819 = vmatprep.subr.mxu0 0.0
        %820 = vmatpush2.msra.mxu0 0.0
        %821 = vmatprep.subr.mxu0 0.0
        %822 = vmatpush2.msra.mxu0 0.0
        %823 = vmatprep.subr.mxu0 0.0
        %824 = vmatpush2.msra.mxu0 0.0
        %825 = vmatprep.subr.mxu0 0.0
        %826 = vmatpush2.msra.mxu0 0.0
        %827 = vmatprep.subr.mxu0 0.0
        %828 = vmatpush2.msra.mxu0 0.0
        %829 = vmatprep.subr.mxu0 0.0
        %830 = vmatpush2.msra.mxu0 0.0
        %831 = vmatprep.subr.mxu0 0.0
        %832 = vmatpush2.msra.mxu0 0.0
        %833 = vmatprep.subr.mxu0 0.0
        %834 = vmatpush2.msra.mxu0 0.0
        %835 = vmatprep.subr.mxu0 0.0
        %836 = vmatpush2.msra.mxu0 0.0
        %837 = vmatprep.subr.mxu0 0.0
        %838 = vmatpush2.msra.mxu0 0.0
        %839 = vmatprep.subr.mxu0 0.0
        %840 = vmatpush2.msra.mxu0 0.0
        %841 = vmatprep.mubr.f32.mxu0 0.0
        %842 = vmatmul.mubr.f32.gmra.mxu0 %v330
        %v843 = vpop.f32.mrf.mxu0
        %v844 = vadd.f32 %v767, %v843
        %v845 = vpop.f32.mrf.mxu0
        %v846 = vadd.f32 %v769, %v845
        %847 = vmatprep.mubr.f32.mxu0 0.0
        %848 = vmatmul.mubr.f32.gmra.mxu0 %v331
        %v849 = vpop.f32.mrf.mxu0
        %v850 = vadd.f32 %v773, %v849
        %v851 = vpop.f32.mrf.mxu0
        %v852 = vadd.f32 %v775, %v851
        %853 = vdwg.mxu0
        %v854 = vrot.slane %v844, 7
        %v855 = vrot.slane %v846, 7
        %v856 = vrot.slane %v850, 7
        %v857 = vrot.slane %v852, 7
        %v858 = vsel %vm320, %v854, %v856
        %v859 = vsel %vm320, %v855, %v857
        %v860 = vsel %vm320, %v856, %v854
        %v861 = vsel %vm320, %v857, %v855
        %v862 = vsel %vm314, 0.0, %v860
        %v863 = vsel %vm314, 0.0, %v861
        %v864 = vsel %vm315, 0.0, %v858
        %v865 = vsel %vm315, 0.0, %v859
        %v866 = vrot.slane %v690, 1
        %v867 = vrot.slane %v692, 1
        %v868 = vrot.slane %v696, 1
        %v869 = vrot.slane %v698, 1
        %v870 = vsel %vm327, %v866, %v868
        %v871 = vsel %vm327, %v867, %v869
        %v872 = vsel %vm327, %v868, %v866
        %v873 = vsel %vm327, %v869, %v867
        %v874 = vsel %vm316, 0.0, %v870
        %v875 = vsel %vm316, 0.0, %v871
        %v876 = vsel %vm317, 0.0, %v872
        %v877 = vsel %vm317, 0.0, %v873
        %v878 = vld [vmem:[#allocation6] sm:$0xff]
        %v879 = vld [vmem:[#allocation6 + $0x8] sm:$0xff]
        %v880 = vld [vmem:[#allocation6 + $0x10] sm:$0xff]
        %v881 = vld [vmem:[#allocation6 + $0x18] sm:$0xff]
        %v882 = vld [vmem:[#allocation6 + $0x20] sm:$0xff]
        %v883 = vld [vmem:[#allocation6 + $0x28] sm:$0xff]
        %v884 = vld [vmem:[#allocation6 + $0x30] sm:$0xff]
        %v885 = vld [vmem:[#allocation6 + $0x38] sm:$0xff]
        %v886 = vld [vmem:[#allocation6 + $0x40] sm:$0xff]
        %v887 = vld [vmem:[#allocation6 + $0x48] sm:$0xff]
        %v888 = vld [vmem:[#allocation6 + $0x50] sm:$0xff]
        %v889 = vld [vmem:[#allocation6 + $0x58] sm:$0xff]
        %v890 = vld [vmem:[#allocation6 + $0x60] sm:$0xff]
        %v891 = vld [vmem:[#allocation6 + $0x68] sm:$0xff]
        %v892 = vld [vmem:[#allocation6 + $0x70] sm:$0xff]
        %v893 = vld [vmem:[#allocation6 + $0x78] sm:$0xff]
        %v894 = vld [vmem:[#allocation6 + $0x80] sm:$0xff]
        %v895 = vld [vmem:[#allocation6 + $0x88] sm:$0xff]
        %v896 = vld [vmem:[#allocation6 + $0x90] sm:$0xff]
        %v897 = vld [vmem:[#allocation6 + $0x98] sm:$0xff]
        %v898 = vld [vmem:[#allocation6 + $0xa0] sm:$0xff]
        %v899 = vld [vmem:[#allocation6 + $0xa8] sm:$0xff]
        %v900 = vld [vmem:[#allocation6 + $0xb0] sm:$0xff]
        %v901 = vld [vmem:[#allocation6 + $0xb8] sm:$0xff]
        %v902 = vld [vmem:[#allocation6 + $0xc0] sm:$0xff]
        %v903 = vld [vmem:[#allocation6 + $0xc8] sm:$0xff]
        %v904 = vld [vmem:[#allocation6 + $0xd0] sm:$0xff]
        %v905 = vld [vmem:[#allocation6 + $0xd8] sm:$0xff]
        %v906 = vld [vmem:[#allocation6 + $0xe0] sm:$0xff]
        %v907 = vld [vmem:[#allocation6 + $0xe8] sm:$0xff]
        %v908 = vld [vmem:[#allocation6 + $0xf0] sm:$0xff]
        %v909 = vld [vmem:[#allocation6 + $0xf8] sm:$0xff]
        %v910 = vld [vmem:[#allocation6 + $0x100] sm:$0xff]
        %v911 = vld [vmem:[#allocation6 + $0x108] sm:$0xff]
        %v912 = vld [vmem:[#allocation6 + $0x110] sm:$0xff]
        %v913 = vld [vmem:[#allocation6 + $0x118] sm:$0xff]
        %v914 = vld [vmem:[#allocation6 + $0x120] sm:$0xff]
        %v915 = vld [vmem:[#allocation6 + $0x128] sm:$0xff]
        %v916 = vld [vmem:[#allocation6 + $0x130] sm:$0xff]
        %v917 = vld [vmem:[#allocation6 + $0x138] sm:$0xff]
        %v918 = vld [vmem:[#allocation6 + $0x140] sm:$0xff]
        %v919 = vld [vmem:[#allocation6 + $0x148] sm:$0xff]
        %v920 = vld [vmem:[#allocation6 + $0x150] sm:$0xff]
        %v921 = vld [vmem:[#allocation6 + $0x158] sm:$0xff]
        %v922 = vld [vmem:[#allocation6 + $0x160] sm:$0xff]
        %v923 = vld [vmem:[#allocation6 + $0x168] sm:$0xff]
        %v924 = vld [vmem:[#allocation6 + $0x170] sm:$0xff]
        %v925 = vld [vmem:[#allocation6 + $0x178] sm:$0xff]
        %v926 = vld [vmem:[#allocation6 + $0x180] sm:$0xff]
        %v927 = vld [vmem:[#allocation6 + $0x188] sm:$0xff]
        %v928 = vld [vmem:[#allocation6 + $0x190] sm:$0xff]
        %v929 = vld [vmem:[#allocation6 + $0x198] sm:$0xff]
        %v930 = vld [vmem:[#allocation6 + $0x1a0] sm:$0xff]
        %v931 = vld [vmem:[#allocation6 + $0x1a8] sm:$0xff]
        %v932 = vld [vmem:[#allocation6 + $0x1b0] sm:$0xff]
        %v933 = vld [vmem:[#allocation6 + $0x1b8] sm:$0xff]
        %v934 = vld [vmem:[#allocation6 + $0x1c0] sm:$0xff]
        %v935 = vld [vmem:[#allocation6 + $0x1c8] sm:$0xff]
        %v936 = vld [vmem:[#allocation6 + $0x1d0] sm:$0xff]
        %v937 = vld [vmem:[#allocation6 + $0x1d8] sm:$0xff]
        %v938 = vld [vmem:[#allocation6 + $0x1e0] sm:$0xff]
        %v939 = vld [vmem:[#allocation6 + $0x1e8] sm:$0xff]
        %v940 = vld [vmem:[#allocation6 + $0x1f0] sm:$0xff]
        %v941 = vld [vmem:[#allocation6 + $0x1f8] sm:$0xff]
        %v942 = vld [vmem:[#allocation6 + $0x200] sm:$0xff]
        %v943 = vld [vmem:[#allocation6 + $0x208] sm:$0xff]
        %v944 = vld [vmem:[#allocation6 + $0x210] sm:$0xff]
        %v945 = vld [vmem:[#allocation6 + $0x218] sm:$0xff]
        %v946 = vld [vmem:[#allocation6 + $0x220] sm:$0xff]
        %v947 = vld [vmem:[#allocation6 + $0x228] sm:$0xff]
        %v948 = vld [vmem:[#allocation6 + $0x230] sm:$0xff]
        %v949 = vld [vmem:[#allocation6 + $0x238] sm:$0xff]
        %v950 = vld [vmem:[#allocation6 + $0x240] sm:$0xff]
        %v951 = vld [vmem:[#allocation6 + $0x248] sm:$0xff]
        %v952 = vld [vmem:[#allocation6 + $0x250] sm:$0xff]
        %v953 = vld [vmem:[#allocation6 + $0x258] sm:$0xff]
        %v954 = vld [vmem:[#allocation6 + $0x260] sm:$0xff]
        %v955 = vld [vmem:[#allocation6 + $0x268] sm:$0xff]
        %v956 = vld [vmem:[#allocation6 + $0x270] sm:$0xff]
        %v957 = vld [vmem:[#allocation6 + $0x278] sm:$0xff]
        %v958 = vld [vmem:[#allocation6 + $0x280] sm:$0xff]
        %v959 = vld [vmem:[#allocation6 + $0x288] sm:$0xff]
        %v960 = vld [vmem:[#allocation6 + $0x290] sm:$0xff]
        %v961 = vld [vmem:[#allocation6 + $0x298] sm:$0xff]
        %v962 = vld [vmem:[#allocation6 + $0x2a0] sm:$0xff]
        %v963 = vld [vmem:[#allocation6 + $0x2a8] sm:$0xff]
        %v964 = vld [vmem:[#allocation6 + $0x2b0] sm:$0xff]
        %v965 = vld [vmem:[#allocation6 + $0x2b8] sm:$0xff]
        %v966 = vld [vmem:[#allocation6 + $0x2c0] sm:$0xff]
        %v967 = vld [vmem:[#allocation6 + $0x2c8] sm:$0xff]
        %v968 = vld [vmem:[#allocation6 + $0x2d0] sm:$0xff]
        %v969 = vld [vmem:[#allocation6 + $0x2d8] sm:$0xff]
        %v970 = vld [vmem:[#allocation6 + $0x2e0] sm:$0xff]
        %v971 = vld [vmem:[#allocation6 + $0x2e8] sm:$0xff]
        %v972 = vld [vmem:[#allocation6 + $0x2f0] sm:$0xff]
        %v973 = vld [vmem:[#allocation6 + $0x2f8] sm:$0xff]
        %v974 = vld [vmem:[#allocation6 + $0x300] sm:$0xff]
        %v975 = vld [vmem:[#allocation6 + $0x308] sm:$0xff]
        %v976 = vld [vmem:[#allocation6 + $0x310] sm:$0xff]
        %v977 = vld [vmem:[#allocation6 + $0x318] sm:$0xff]
        %v978 = vld [vmem:[#allocation6 + $0x320] sm:$0xff]
        %v979 = vld [vmem:[#allocation6 + $0x328] sm:$0xff]
        %v980 = vld [vmem:[#allocation6 + $0x330] sm:$0xff]
        %v981 = vld [vmem:[#allocation6 + $0x338] sm:$0xff]
        %v982 = vld [vmem:[#allocation6 + $0x340] sm:$0xff]
        %v983 = vld [vmem:[#allocation6 + $0x348] sm:$0xff]
        %v984 = vld [vmem:[#allocation6 + $0x350] sm:$0xff]
        %v985 = vld [vmem:[#allocation6 + $0x358] sm:$0xff]
        %v986 = vld [vmem:[#allocation6 + $0x360] sm:$0xff]
        %v987 = vld [vmem:[#allocation6 + $0x368] sm:$0xff]
        %v988 = vld [vmem:[#allocation6 + $0x370] sm:$0xff]
        %v989 = vld [vmem:[#allocation6 + $0x378] sm:$0xff]
        %v990 = vld [vmem:[#allocation6 + $0x380] sm:$0xff]
        %v991 = vld [vmem:[#allocation6 + $0x388] sm:$0xff]
        %v992 = vld [vmem:[#allocation6 + $0x390] sm:$0xff]
        %v993 = vld [vmem:[#allocation6 + $0x398] sm:$0xff]
        %v994 = vld [vmem:[#allocation6 + $0x3a0] sm:$0xff]
        %v995 = vld [vmem:[#allocation6 + $0x3a8] sm:$0xff]
        %v996 = vld [vmem:[#allocation6 + $0x3b0] sm:$0xff]
        %v997 = vld [vmem:[#allocation6 + $0x3b8] sm:$0xff]
        %v998 = vld [vmem:[#allocation6 + $0x3c0] sm:$0xff]
        %v999 = vld [vmem:[#allocation6 + $0x3c8] sm:$0xff]
        %v1000 = vld [vmem:[#allocation6 + $0x3d0] sm:$0xff]
        %v1001 = vld [vmem:[#allocation6 + $0x3d8] sm:$0xff]
        %v1002 = vld [vmem:[#allocation6 + $0x3e0] sm:$0xff]
        %v1003 = vld [vmem:[#allocation6 + $0x3e8] sm:$0xff]
        %v1004 = vld [vmem:[#allocation6 + $0x3f0] sm:$0xff]
        %v1005 = vld [vmem:[#allocation6 + $0x3f8] sm:$0xff]
        %v1006 = vld [vmem:[#allocation6 + $0x400] sm:$0xff]
        %v1007 = vld [vmem:[#allocation6 + $0x408] sm:$0xff]
        %v1008 = vld [vmem:[#allocation6 + $0x410] sm:$0xff]
        %v1009 = vld [vmem:[#allocation6 + $0x418] sm:$0xff]
        %v1010 = vld [vmem:[#allocation6 + $0x420] sm:$0xff]
        %v1011 = vld [vmem:[#allocation6 + $0x428] sm:$0xff]
        %v1012 = vld [vmem:[#allocation6 + $0x430] sm:$0xff]
        %v1013 = vld [vmem:[#allocation6 + $0x438] sm:$0xff]
        %v1014 = vld [vmem:[#allocation6 + $0x440] sm:$0xff]
        %v1015 = vld [vmem:[#allocation6 + $0x448] sm:$0xff]
        %v1016 = vld [vmem:[#allocation6 + $0x450] sm:$0xff]
        %v1017 = vld [vmem:[#allocation6 + $0x458] sm:$0xff]
        %v1018 = vld [vmem:[#allocation6 + $0x460] sm:$0xff]
        %v1019 = vld [vmem:[#allocation6 + $0x468] sm:$0xff]
        %v1020 = vld [vmem:[#allocation6 + $0x470] sm:$0xff]
        %v1021 = vld [vmem:[#allocation6 + $0x478] sm:$0xff]
        %v1022 = vld [vmem:[#allocation6 + $0x480] sm:$0xff]
        %v1023 = vld [vmem:[#allocation6 + $0x488] sm:$0xff]
        %v1024 = vld [vmem:[#allocation6 + $0x490] sm:$0xff]
        %v1025 = vld [vmem:[#allocation6 + $0x498] sm:$0xff]
        %v1026 = vld [vmem:[#allocation6 + $0x4a0] sm:$0xff]
        %v1027 = vld [vmem:[#allocation6 + $0x4a8] sm:$0xff]
        %v1028 = vld [vmem:[#allocation6 + $0x4b0] sm:$0xff]
        %v1029 = vld [vmem:[#allocation6 + $0x4b8] sm:$0xff]
        %v1030 = vld [vmem:[#allocation6 + $0x4c0] sm:$0xff]
        %v1031 = vld [vmem:[#allocation6 + $0x4c8] sm:$0xff]
        %v1032 = vld [vmem:[#allocation6 + $0x4d0] sm:$0xff]
        %v1033 = vld [vmem:[#allocation6 + $0x4d8] sm:$0xff]
        %v1034 = vld [vmem:[#allocation6 + $0x4e0] sm:$0xff]
        %v1035 = vld [vmem:[#allocation6 + $0x4e8] sm:$0xff]
        %v1036 = vld [vmem:[#allocation6 + $0x4f0] sm:$0xff]
        %v1037 = vld [vmem:[#allocation6 + $0x4f8] sm:$0xff]
        %v1038 = vld [vmem:[#allocation6 + $0x500] sm:$0xff]
        %v1039 = vld [vmem:[#allocation6 + $0x508] sm:$0xff]
        %v1040 = vld [vmem:[#allocation6 + $0x510] sm:$0xff]
        %v1041 = vld [vmem:[#allocation6 + $0x518] sm:$0xff]
        %v1042 = vld [vmem:[#allocation6 + $0x520] sm:$0xff]
        %v1043 = vld [vmem:[#allocation6 + $0x528] sm:$0xff]
        %v1044 = vld [vmem:[#allocation6 + $0x530] sm:$0xff]
        %v1045 = vld [vmem:[#allocation6 + $0x538] sm:$0xff]
        %v1046 = vld [vmem:[#allocation6 + $0x540] sm:$0xff]
        %v1047 = vld [vmem:[#allocation6 + $0x548] sm:$0xff]
        %v1048 = vld [vmem:[#allocation6 + $0x550] sm:$0xff]
        %v1049 = vld [vmem:[#allocation6 + $0x558] sm:$0xff]
        %v1050 = vld [vmem:[#allocation6 + $0x560] sm:$0xff]
        %v1051 = vld [vmem:[#allocation6 + $0x568] sm:$0xff]
        %v1052 = vld [vmem:[#allocation6 + $0x570] sm:$0xff]
        %v1053 = vld [vmem:[#allocation6 + $0x578] sm:$0xff]
        %v1054 = vld [vmem:[#allocation6 + $0x580] sm:$0xff]
        %v1055 = vld [vmem:[#allocation6 + $0x588] sm:$0xff]
        %v1056 = vld [vmem:[#allocation6 + $0x590] sm:$0xff]
        %v1057 = vld [vmem:[#allocation6 + $0x598] sm:$0xff]
        %v1058 = vld [vmem:[#allocation6 + $0x5a0] sm:$0xff]
        %v1059 = vld [vmem:[#allocation6 + $0x5a8] sm:$0xff]
        %v1060 = vld [vmem:[#allocation6 + $0x5b0] sm:$0xff]
        %v1061 = vld [vmem:[#allocation6 + $0x5b8] sm:$0xff]
        %v1062 = vld [vmem:[#allocation6 + $0x5c0] sm:$0xff]
        %v1063 = vld [vmem:[#allocation6 + $0x5c8] sm:$0xff]
        %v1064 = vld [vmem:[#allocation6 + $0x5d0] sm:$0xff]
        %v1065 = vld [vmem:[#allocation6 + $0x5d8] sm:$0xff]
        %v1066 = vld [vmem:[#allocation6 + $0x5e0] sm:$0xff]
        %v1067 = vld [vmem:[#allocation6 + $0x5e8] sm:$0xff]
        %v1068 = vld [vmem:[#allocation6 + $0x5f0] sm:$0xff]
        %v1069 = vld [vmem:[#allocation6 + $0x5f8] sm:$0xff]
        %v1070 = vld [vmem:[#allocation6 + $0x600] sm:$0xff]
        %v1071 = vld [vmem:[#allocation6 + $0x608] sm:$0xff]
        %v1072 = vld [vmem:[#allocation6 + $0x610] sm:$0xff]
        %v1073 = vld [vmem:[#allocation6 + $0x618] sm:$0xff]
        %v1074 = vld [vmem:[#allocation6 + $0x620] sm:$0xff]
        %v1075 = vld [vmem:[#allocation6 + $0x628] sm:$0xff]
        %v1076 = vld [vmem:[#allocation6 + $0x630] sm:$0xff]
        %v1077 = vld [vmem:[#allocation6 + $0x638] sm:$0xff]
        %v1078 = vld [vmem:[#allocation6 + $0x640] sm:$0xff]
        %v1079 = vld [vmem:[#allocation6 + $0x648] sm:$0xff]
        %v1080 = vld [vmem:[#allocation6 + $0x650] sm:$0xff]
        %v1081 = vld [vmem:[#allocation6 + $0x658] sm:$0xff]
        %v1082 = vld [vmem:[#allocation6 + $0x660] sm:$0xff]
        %v1083 = vld [vmem:[#allocation6 + $0x668] sm:$0xff]
        %v1084 = vld [vmem:[#allocation6 + $0x670] sm:$0xff]
        %v1085 = vld [vmem:[#allocation6 + $0x678] sm:$0xff]
        %v1086 = vld [vmem:[#allocation6 + $0x680] sm:$0xff]
        %v1087 = vld [vmem:[#allocation6 + $0x688] sm:$0xff]
        %v1088 = vld [vmem:[#allocation6 + $0x690] sm:$0xff]
        %v1089 = vld [vmem:[#allocation6 + $0x698] sm:$0xff]
        %v1090 = vld [vmem:[#allocation6 + $0x6a0] sm:$0xff]
        %v1091 = vld [vmem:[#allocation6 + $0x6a8] sm:$0xff]
        %v1092 = vld [vmem:[#allocation6 + $0x6b0] sm:$0xff]
        %v1093 = vld [vmem:[#allocation6 + $0x6b8] sm:$0xff]
        %v1094 = vld [vmem:[#allocation6 + $0x6c0] sm:$0xff]
        %v1095 = vld [vmem:[#allocation6 + $0x6c8] sm:$0xff]
        %v1096 = vld [vmem:[#allocation6 + $0x6d0] sm:$0xff]
        %v1097 = vld [vmem:[#allocation6 + $0x6d8] sm:$0xff]
        %v1098 = vld [vmem:[#allocation6 + $0x6e0] sm:$0xff]
        %v1099 = vld [vmem:[#allocation6 + $0x6e8] sm:$0xff]
        %v1100 = vld [vmem:[#allocation6 + $0x6f0] sm:$0xff]
        %v1101 = vld [vmem:[#allocation6 + $0x6f8] sm:$0xff]
        %v1102 = vld [vmem:[#allocation6 + $0x700] sm:$0xff]
        %v1103 = vld [vmem:[#allocation6 + $0x708] sm:$0xff]
        %v1104 = vld [vmem:[#allocation6 + $0x710] sm:$0xff]
        %v1105 = vld [vmem:[#allocation6 + $0x718] sm:$0xff]
        %v1106 = vld [vmem:[#allocation6 + $0x720] sm:$0xff]
        %v1107 = vld [vmem:[#allocation6 + $0x728] sm:$0xff]
        %v1108 = vld [vmem:[#allocation6 + $0x730] sm:$0xff]
        %v1109 = vld [vmem:[#allocation6 + $0x738] sm:$0xff]
        %v1110 = vld [vmem:[#allocation6 + $0x740] sm:$0xff]
        %v1111 = vld [vmem:[#allocation6 + $0x748] sm:$0xff]
        %v1112 = vld [vmem:[#allocation6 + $0x750] sm:$0xff]
        %v1113 = vld [vmem:[#allocation6 + $0x758] sm:$0xff]
        %v1114 = vld [vmem:[#allocation6 + $0x760] sm:$0xff]
        %v1115 = vld [vmem:[#allocation6 + $0x768] sm:$0xff]
        %v1116 = vld [vmem:[#allocation6 + $0x770] sm:$0xff]
        %v1117 = vld [vmem:[#allocation6 + $0x778] sm:$0xff]
        %v1118 = vld [vmem:[#allocation6 + $0x780] sm:$0xff]
        %v1119 = vld [vmem:[#allocation6 + $0x788] sm:$0xff]
        %v1120 = vld [vmem:[#allocation6 + $0x790] sm:$0xff]
        %v1121 = vld [vmem:[#allocation6 + $0x798] sm:$0xff]
        %v1122 = vld [vmem:[#allocation6 + $0x7a0] sm:$0xff]
        %v1123 = vld [vmem:[#allocation6 + $0x7a8] sm:$0xff]
        %v1124 = vld [vmem:[#allocation6 + $0x7b0] sm:$0xff]
        %v1125 = vld [vmem:[#allocation6 + $0x7b8] sm:$0xff]
        %v1126 = vld [vmem:[#allocation6 + $0x7c0] sm:$0xff]
        %v1127 = vld [vmem:[#allocation6 + $0x7c8] sm:$0xff]
        %v1128 = vld [vmem:[#allocation6 + $0x7d0] sm:$0xff]
        %v1129 = vld [vmem:[#allocation6 + $0x7d8] sm:$0xff]
        %v1130 = vld [vmem:[#allocation6 + $0x7e0] sm:$0xff]
        %v1131 = vld [vmem:[#allocation6 + $0x7e8] sm:$0xff]
        %v1132 = vld [vmem:[#allocation6 + $0x7f0] sm:$0xff]
        %v1133 = vld [vmem:[#allocation6 + $0x7f8] sm:$0xff]
        %v1134 = vld [vmem:[#allocation6 + $0x800] sm:$0xff]
        %v1135 = vld [vmem:[#allocation6 + $0x808] sm:$0xff]
        %v1136 = vld [vmem:[#allocation6 + $0x810] sm:$0xff]
        %v1137 = vld [vmem:[#allocation6 + $0x818] sm:$0xff]
        %v1138 = vld [vmem:[#allocation6 + $0x820] sm:$0xff]
        %v1139 = vld [vmem:[#allocation6 + $0x828] sm:$0xff]
        %v1140 = vld [vmem:[#allocation6 + $0x830] sm:$0xff]
        %v1141 = vld [vmem:[#allocation6 + $0x838] sm:$0xff]
        %v1142 = vld [vmem:[#allocation6 + $0x840] sm:$0xff]
        %v1143 = vld [vmem:[#allocation6 + $0x848] sm:$0xff]
        %v1144 = vld [vmem:[#allocation6 + $0x850] sm:$0xff]
        %v1145 = vld [vmem:[#allocation6 + $0x858] sm:$0xff]
        %v1146 = vld [vmem:[#allocation6 + $0x860] sm:$0xff]
        %v1147 = vld [vmem:[#allocation6 + $0x868] sm:$0xff]
        %v1148 = vld [vmem:[#allocation6 + $0x870] sm:$0xff]
        %v1149 = vld [vmem:[#allocation6 + $0x878] sm:$0xff]
        %v1150 = vld [vmem:[#allocation6 + $0x880] sm:$0xff]
        %v1151 = vld [vmem:[#allocation6 + $0x888] sm:$0xff]
        %v1152 = vld [vmem:[#allocation6 + $0x890] sm:$0xff]
        %v1153 = vld [vmem:[#allocation6 + $0x898] sm:$0xff]
        %v1154 = vld [vmem:[#allocation6 + $0x8a0] sm:$0xff]
        %v1155 = vld [vmem:[#allocation6 + $0x8a8] sm:$0xff]
        %v1156 = vld [vmem:[#allocation6 + $0x8b0] sm:$0xff]
        %v1157 = vld [vmem:[#allocation6 + $0x8b8] sm:$0xff]
        %v1158 = vld [vmem:[#allocation6 + $0x8c0] sm:$0xff]
        %v1159 = vld [vmem:[#allocation6 + $0x8c8] sm:$0xff]
        %v1160 = vld [vmem:[#allocation6 + $0x8d0] sm:$0xff]
        %v1161 = vld [vmem:[#allocation6 + $0x8d8] sm:$0xff]
        %v1162 = vld [vmem:[#allocation6 + $0x8e0] sm:$0xff]
        %v1163 = vld [vmem:[#allocation6 + $0x8e8] sm:$0xff]
        %v1164 = vld [vmem:[#allocation6 + $0x8f0] sm:$0xff]
        %v1165 = vld [vmem:[#allocation6 + $0x8f8] sm:$0xff]
        %v1166 = vld [vmem:[#allocation6 + $0x900] sm:$0xff]
        %v1167 = vld [vmem:[#allocation6 + $0x908] sm:$0xff]
        %v1168 = vld [vmem:[#allocation6 + $0x910] sm:$0xff]
        %v1169 = vld [vmem:[#allocation6 + $0x918] sm:$0xff]
        %v1170 = vld [vmem:[#allocation6 + $0x920] sm:$0xff]
        %v1171 = vld [vmem:[#allocation6 + $0x928] sm:$0xff]
        %v1172 = vld [vmem:[#allocation6 + $0x930] sm:$0xff]
        %v1173 = vld [vmem:[#allocation6 + $0x938] sm:$0xff]
        %v1174 = vld [vmem:[#allocation6 + $0x940] sm:$0xff]
        %v1175 = vld [vmem:[#allocation6 + $0x948] sm:$0xff]
        %v1176 = vld [vmem:[#allocation6 + $0x950] sm:$0xff]
        %v1177 = vld [vmem:[#allocation6 + $0x958] sm:$0xff]
        %v1178 = vld [vmem:[#allocation6 + $0x960] sm:$0xff]
        %v1179 = vld [vmem:[#allocation6 + $0x968] sm:$0xff]
        %v1180 = vld [vmem:[#allocation6 + $0x970] sm:$0xff]
        %v1181 = vld [vmem:[#allocation6 + $0x978] sm:$0xff]
        %v1182 = vld [vmem:[#allocation6 + $0x980] sm:$0xff]
        %v1183 = vld [vmem:[#allocation6 + $0x988] sm:$0xff]
        %v1184 = vld [vmem:[#allocation6 + $0x990] sm:$0xff]
        %v1185 = vld [vmem:[#allocation6 + $0x998] sm:$0xff]
        %v1186 = vld [vmem:[#allocation6 + $0x9a0] sm:$0xff]
        %v1187 = vld [vmem:[#allocation6 + $0x9a8] sm:$0xff]
        %v1188 = vld [vmem:[#allocation6 + $0x9b0] sm:$0xff]
        %v1189 = vld [vmem:[#allocation6 + $0x9b8] sm:$0xff]
        %v1190 = vld [vmem:[#allocation6 + $0x9c0] sm:$0xff]
        %v1191 = vld [vmem:[#allocation6 + $0x9c8] sm:$0xff]
        %v1192 = vld [vmem:[#allocation6 + $0x9d0] sm:$0xff]
        %v1193 = vld [vmem:[#allocation6 + $0x9d8] sm:$0xff]
        %v1194 = vld [vmem:[#allocation6 + $0x9e0] sm:$0xff]
        %v1195 = vld [vmem:[#allocation6 + $0x9e8] sm:$0xff]
        %v1196 = vld [vmem:[#allocation6 + $0x9f0] sm:$0xff]
        %v1197 = vld [vmem:[#allocation6 + $0x9f8] sm:$0xff]
        %v1198 = vld [vmem:[#allocation6 + $0xa00] sm:$0xff]
        %v1199 = vld [vmem:[#allocation6 + $0xa08] sm:$0xff]
        %v1200 = vld [vmem:[#allocation6 + $0xa10] sm:$0xff]
        %v1201 = vld [vmem:[#allocation6 + $0xa18] sm:$0xff]
        %v1202 = vld [vmem:[#allocation6 + $0xa20] sm:$0xff]
        %v1203 = vld [vmem:[#allocation6 + $0xa28] sm:$0xff]
        %v1204 = vld [vmem:[#allocation6 + $0xa30] sm:$0xff]
        %v1205 = vld [vmem:[#allocation6 + $0xa38] sm:$0xff]
        %v1206 = vld [vmem:[#allocation6 + $0xa40] sm:$0xff]
        %v1207 = vld [vmem:[#allocation6 + $0xa48] sm:$0xff]
        %v1208 = vld [vmem:[#allocation6 + $0xa50] sm:$0xff]
        %v1209 = vld [vmem:[#allocation6 + $0xa58] sm:$0xff]
        %v1210 = vld [vmem:[#allocation6 + $0xa60] sm:$0xff]
        %v1211 = vld [vmem:[#allocation6 + $0xa68] sm:$0xff]
        %v1212 = vld [vmem:[#allocation6 + $0xa70] sm:$0xff]
        %v1213 = vld [vmem:[#allocation6 + $0xa78] sm:$0xff]
        %v1214 = vld [vmem:[#allocation6 + $0xa80] sm:$0xff]
        %v1215 = vld [vmem:[#allocation6 + $0xa88] sm:$0xff]
        %v1216 = vld [vmem:[#allocation6 + $0xa90] sm:$0xff]
        %v1217 = vld [vmem:[#allocation6 + $0xa98] sm:$0xff]
        %v1218 = vld [vmem:[#allocation6 + $0xaa0] sm:$0xff]
        %v1219 = vld [vmem:[#allocation6 + $0xaa8] sm:$0xff]
        %v1220 = vld [vmem:[#allocation6 + $0xab0] sm:$0xff]
        %v1221 = vld [vmem:[#allocation6 + $0xab8] sm:$0xff]
        %v1222 = vld [vmem:[#allocation6 + $0xac0] sm:$0xff]
        %v1223 = vld [vmem:[#allocation6 + $0xac8] sm:$0xff]
        %v1224 = vld [vmem:[#allocation6 + $0xad0] sm:$0xff]
        %v1225 = vld [vmem:[#allocation6 + $0xad8] sm:$0xff]
        %v1226 = vld [vmem:[#allocation6 + $0xae0] sm:$0xff]
        %v1227 = vld [vmem:[#allocation6 + $0xae8] sm:$0xff]
        %v1228 = vld [vmem:[#allocation6 + $0xaf0] sm:$0xff]
        %v1229 = vld [vmem:[#allocation6 + $0xaf8] sm:$0xff]
        %v1230 = vld [vmem:[#allocation6 + $0xb00] sm:$0xff]
        %v1231 = vld [vmem:[#allocation6 + $0xb08] sm:$0xff]
        %v1232 = vld [vmem:[#allocation6 + $0xb10] sm:$0xff]
        %v1233 = vld [vmem:[#allocation6 + $0xb18] sm:$0xff]
        %v1234 = vld [vmem:[#allocation6 + $0xb20] sm:$0xff]
        %v1235 = vld [vmem:[#allocation6 + $0xb28] sm:$0xff]
        %v1236 = vld [vmem:[#allocation6 + $0xb30] sm:$0xff]
        %v1237 = vld [vmem:[#allocation6 + $0xb38] sm:$0xff]
        %v1238 = vld [vmem:[#allocation6 + $0xb40] sm:$0xff]
        %v1239 = vld [vmem:[#allocation6 + $0xb48] sm:$0xff]
        %v1240 = vld [vmem:[#allocation6 + $0xb50] sm:$0xff]
        %v1241 = vld [vmem:[#allocation6 + $0xb58] sm:$0xff]
        %v1242 = vld [vmem:[#allocation6 + $0xb60] sm:$0xff]
        %v1243 = vld [vmem:[#allocation6 + $0xb68] sm:$0xff]
        %v1244 = vld [vmem:[#allocation6 + $0xb70] sm:$0xff]
        %v1245 = vld [vmem:[#allocation6 + $0xb78] sm:$0xff]
        %v1246 = vld [vmem:[#allocation6 + $0xb80] sm:$0xff]
        %v1247 = vld [vmem:[#allocation6 + $0xb88] sm:$0xff]
        %v1248 = vld [vmem:[#allocation6 + $0xb90] sm:$0xff]
        %v1249 = vld [vmem:[#allocation6 + $0xb98] sm:$0xff]
        %v1250 = vld [vmem:[#allocation6 + $0xba0] sm:$0xff]
        %v1251 = vld [vmem:[#allocation6 + $0xba8] sm:$0xff]
        %v1252 = vld [vmem:[#allocation6 + $0xbb0] sm:$0xff]
        %v1253 = vld [vmem:[#allocation6 + $0xbb8] sm:$0xff]
        %v1254 = vld [vmem:[#allocation6 + $0xbc0] sm:$0xff]
        %v1255 = vld [vmem:[#allocation6 + $0xbc8] sm:$0xff]
        %v1256 = vld [vmem:[#allocation6 + $0xbd0] sm:$0xff]
        %v1257 = vld [vmem:[#allocation6 + $0xbd8] sm:$0xff]
        %v1258 = vld [vmem:[#allocation6 + $0xbe0] sm:$0xff]
        %v1259 = vld [vmem:[#allocation6 + $0xbe8] sm:$0xff]
        %v1260 = vld [vmem:[#allocation6 + $0xbf0] sm:$0xff]
        %v1261 = vld [vmem:[#allocation6 + $0xbf8] sm:$0xff]
        %v1262 = vld [vmem:[#allocation6 + $0xc00] sm:$0xff]
        %v1263 = vld [vmem:[#allocation6 + $0xc08] sm:$0xff]
        %v1264 = vld [vmem:[#allocation6 + $0xc10] sm:$0xff]
        %v1265 = vld [vmem:[#allocation6 + $0xc18] sm:$0xff]
        %v1266 = vld [vmem:[#allocation6 + $0xc20] sm:$0xff]
        %v1267 = vld [vmem:[#allocation6 + $0xc28] sm:$0xff]
        %v1268 = vld [vmem:[#allocation6 + $0xc30] sm:$0xff]
        %v1269 = vld [vmem:[#allocation6 + $0xc38] sm:$0xff]
        %v1270 = vld [vmem:[#allocation6 + $0xc40] sm:$0xff]
        %v1271 = vld [vmem:[#allocation6 + $0xc48] sm:$0xff]
        %v1272 = vld [vmem:[#allocation6 + $0xc50] sm:$0xff]
        %v1273 = vld [vmem:[#allocation6 + $0xc58] sm:$0xff]
        %v1274 = vld [vmem:[#allocation6 + $0xc60] sm:$0xff]
        %v1275 = vld [vmem:[#allocation6 + $0xc68] sm:$0xff]
        %v1276 = vld [vmem:[#allocation6 + $0xc70] sm:$0xff]
        %v1277 = vld [vmem:[#allocation6 + $0xc78] sm:$0xff]
        %v1278 = vld [vmem:[#allocation6 + $0xc80] sm:$0xff]
        %v1279 = vld [vmem:[#allocation6 + $0xc88] sm:$0xff]
        %v1280 = vld [vmem:[#allocation6 + $0xc90] sm:$0xff]
        %v1281 = vld [vmem:[#allocation6 + $0xc98] sm:$0xff]
        %v1282 = vld [vmem:[#allocation6 + $0xca0] sm:$0xff]
        %v1283 = vld [vmem:[#allocation6 + $0xca8] sm:$0xff]
        %v1284 = vld [vmem:[#allocation6 + $0xcb0] sm:$0xff]
        %v1285 = vld [vmem:[#allocation6 + $0xcb8] sm:$0xff]
        %v1286 = vld [vmem:[#allocation6 + $0xcc0] sm:$0xff]
        %v1287 = vld [vmem:[#allocation6 + $0xcc8] sm:$0xff]
        %v1288 = vld [vmem:[#allocation6 + $0xcd0] sm:$0xff]
        %v1289 = vld [vmem:[#allocation6 + $0xcd8] sm:$0xff]
        %v1290 = vld [vmem:[#allocation6 + $0xce0] sm:$0xff]
        %v1291 = vld [vmem:[#allocation6 + $0xce8] sm:$0xff]
        %v1292 = vld [vmem:[#allocation6 + $0xcf0] sm:$0xff]
        %v1293 = vld [vmem:[#allocation6 + $0xcf8] sm:$0xff]
        %v1294 = vld [vmem:[#allocation6 + $0xd00] sm:$0xff]
        %v1295 = vld [vmem:[#allocation6 + $0xd08] sm:$0xff]
        %v1296 = vld [vmem:[#allocation6 + $0xd10] sm:$0xff]
        %v1297 = vld [vmem:[#allocation6 + $0xd18] sm:$0xff]
        %v1298 = vld [vmem:[#allocation6 + $0xd20] sm:$0xff]
        %v1299 = vld [vmem:[#allocation6 + $0xd28] sm:$0xff]
        %v1300 = vld [vmem:[#allocation6 + $0xd30] sm:$0xff]
        %v1301 = vld [vmem:[#allocation6 + $0xd38] sm:$0xff]
        %v1302 = vld [vmem:[#allocation6 + $0xd40] sm:$0xff]
        %v1303 = vld [vmem:[#allocation6 + $0xd48] sm:$0xff]
        %v1304 = vld [vmem:[#allocation6 + $0xd50] sm:$0xff]
        %v1305 = vld [vmem:[#allocation6 + $0xd58] sm:$0xff]
        %v1306 = vld [vmem:[#allocation6 + $0xd60] sm:$0xff]
        %v1307 = vld [vmem:[#allocation6 + $0xd68] sm:$0xff]
        %v1308 = vld [vmem:[#allocation6 + $0xd70] sm:$0xff]
        %v1309 = vld [vmem:[#allocation6 + $0xd78] sm:$0xff]
        %v1310 = vld [vmem:[#allocation6 + $0xd80] sm:$0xff]
        %v1311 = vld [vmem:[#allocation6 + $0xd88] sm:$0xff]
        %v1312 = vld [vmem:[#allocation6 + $0xd90] sm:$0xff]
        %v1313 = vld [vmem:[#allocation6 + $0xd98] sm:$0xff]
        %v1314 = vld [vmem:[#allocation6 + $0xda0] sm:$0xff]
        %v1315 = vld [vmem:[#allocation6 + $0xda8] sm:$0xff]
        %v1316 = vld [vmem:[#allocation6 + $0xdb0] sm:$0xff]
        %v1317 = vld [vmem:[#allocation6 + $0xdb8] sm:$0xff]
        %v1318 = vld [vmem:[#allocation6 + $0xdc0] sm:$0xff]
        %v1319 = vld [vmem:[#allocation6 + $0xdc8] sm:$0xff]
        %v1320 = vld [vmem:[#allocation6 + $0xdd0] sm:$0xff]
        %v1321 = vld [vmem:[#allocation6 + $0xdd8] sm:$0xff]
        %v1322 = vld [vmem:[#allocation6 + $0xde0] sm:$0xff]
        %v1323 = vld [vmem:[#allocation6 + $0xde8] sm:$0xff]
        %v1324 = vld [vmem:[#allocation6 + $0xdf0] sm:$0xff]
        %v1325 = vld [vmem:[#allocation6 + $0xdf8] sm:$0xff]
        %v1326 = vld [vmem:[#allocation6 + $0xe00] sm:$0xff]
        %v1327 = vld [vmem:[#allocation6 + $0xe08] sm:$0xff]
        %v1328 = vld [vmem:[#allocation6 + $0xe10] sm:$0xff]
        %v1329 = vld [vmem:[#allocation6 + $0xe18] sm:$0xff]
        %v1330 = vld [vmem:[#allocation6 + $0xe20] sm:$0xff]
        %v1331 = vld [vmem:[#allocation6 + $0xe28] sm:$0xff]
        %v1332 = vld [vmem:[#allocation6 + $0xe30] sm:$0xff]
        %v1333 = vld [vmem:[#allocation6 + $0xe38] sm:$0xff]
        %v1334 = vld [vmem:[#allocation6 + $0xe40] sm:$0xff]
        %v1335 = vld [vmem:[#allocation6 + $0xe48] sm:$0xff]
        %v1336 = vld [vmem:[#allocation6 + $0xe50] sm:$0xff]
        %v1337 = vld [vmem:[#allocation6 + $0xe58] sm:$0xff]
        %v1338 = vld [vmem:[#allocation6 + $0xe60] sm:$0xff]
        %v1339 = vld [vmem:[#allocation6 + $0xe68] sm:$0xff]
        %v1340 = vld [vmem:[#allocation6 + $0xe70] sm:$0xff]
        %v1341 = vld [vmem:[#allocation6 + $0xe78] sm:$0xff]
        %v1342 = vld [vmem:[#allocation6 + $0xe80] sm:$0xff]
        %v1343 = vld [vmem:[#allocation6 + $0xe88] sm:$0xff]
        %v1344 = vld [vmem:[#allocation6 + $0xe90] sm:$0xff]
        %v1345 = vld [vmem:[#allocation6 + $0xe98] sm:$0xff]
        %v1346 = vld [vmem:[#allocation6 + $0xea0] sm:$0xff]
        %v1347 = vld [vmem:[#allocation6 + $0xea8] sm:$0xff]
        %v1348 = vld [vmem:[#allocation6 + $0xeb0] sm:$0xff]
        %v1349 = vld [vmem:[#allocation6 + $0xeb8] sm:$0xff]
        %v1350 = vld [vmem:[#allocation6 + $0xec0] sm:$0xff]
        %v1351 = vld [vmem:[#allocation6 + $0xec8] sm:$0xff]
        %v1352 = vld [vmem:[#allocation6 + $0xed0] sm:$0xff]
        %v1353 = vld [vmem:[#allocation6 + $0xed8] sm:$0xff]
        %v1354 = vld [vmem:[#allocation6 + $0xee0] sm:$0xff]
        %v1355 = vld [vmem:[#allocation6 + $0xee8] sm:$0xff]
        %v1356 = vld [vmem:[#allocation6 + $0xef0] sm:$0xff]
        %v1357 = vld [vmem:[#allocation6 + $0xef8] sm:$0xff]
        %v1358 = vld [vmem:[#allocation6 + $0xf00] sm:$0xff]
        %v1359 = vld [vmem:[#allocation6 + $0xf08] sm:$0xff]
        %v1360 = vld [vmem:[#allocation6 + $0xf10] sm:$0xff]
        %v1361 = vld [vmem:[#allocation6 + $0xf18] sm:$0xff]
        %v1362 = vld [vmem:[#allocation6 + $0xf20] sm:$0xff]
        %v1363 = vld [vmem:[#allocation6 + $0xf28] sm:$0xff]
        %v1364 = vld [vmem:[#allocation6 + $0xf30] sm:$0xff]
        %v1365 = vld [vmem:[#allocation6 + $0xf38] sm:$0xff]
        %v1366 = vld [vmem:[#allocation6 + $0xf40] sm:$0xff]
        %v1367 = vld [vmem:[#allocation6 + $0xf48] sm:$0xff]
        %v1368 = vld [vmem:[#allocation6 + $0xf50] sm:$0xff]
        %v1369 = vld [vmem:[#allocation6 + $0xf58] sm:$0xff]
        %v1370 = vld [vmem:[#allocation6 + $0xf60] sm:$0xff]
        %v1371 = vld [vmem:[#allocation6 + $0xf68] sm:$0xff]
        %v1372 = vld [vmem:[#allocation6 + $0xf70] sm:$0xff]
        %v1373 = vld [vmem:[#allocation6 + $0xf78] sm:$0xff]
        %v1374 = vld [vmem:[#allocation6 + $0xf80] sm:$0xff]
        %v1375 = vld [vmem:[#allocation6 + $0xf88] sm:$0xff]
        %v1376 = vld [vmem:[#allocation6 + $0xf90] sm:$0xff]
        %v1377 = vld [vmem:[#allocation6 + $0xf98] sm:$0xff]
        %v1378 = vld [vmem:[#allocation6 + $0xfa0] sm:$0xff]
        %v1379 = vld [vmem:[#allocation6 + $0xfa8] sm:$0xff]
        %v1380 = vld [vmem:[#allocation6 + $0xfb0] sm:$0xff]
        %v1381 = vld [vmem:[#allocation6 + $0xfb8] sm:$0xff]
        %v1382 = vld [vmem:[#allocation6 + $0xfc0] sm:$0xff]
        %v1383 = vld [vmem:[#allocation6 + $0xfc8] sm:$0xff]
        %v1384 = vld [vmem:[#allocation6 + $0xfd0] sm:$0xff]
        %v1385 = vld [vmem:[#allocation6 + $0xfd8] sm:$0xff]
        %v1386 = vld [vmem:[#allocation6 + $0xfe0] sm:$0xff]
        %v1387 = vld [vmem:[#allocation6 + $0xfe8] sm:$0xff]
        %v1388 = vld [vmem:[#allocation6 + $0xff0] sm:$0xff]
        %v1389 = vld [vmem:[#allocation6 + $0xff8] sm:$0xff]
        %v1390 = vld [vmem:[#allocation7] sm:$0xf]
        %v1392 = vlaneseq
        %v1393 = vshrl.u32 %v1392, 7
        %v1394 = vsub.s32 0, %v1393
        %v1395 = vrot.slane %v1390, %v1394
        %v1396 = vlaneseq
        %v1397 = vshrl.u32 %v1396, 7
        %v1398 = vsub.s32 1, %v1397
        %v1399 = vrot.slane %v1390, %v1398
        %v1400 = vlaneseq
        %v1401 = vshrl.u32 %v1400, 7
        %v1402 = vsub.s32 2, %v1401
        %v1403 = vrot.slane %v1390, %v1402
        %v1404 = vlaneseq
        %v1405 = vshrl.u32 %v1404, 7
        %v1406 = vsub.s32 3, %v1405
        %v1407 = vrot.slane %v1390, %v1406
        %1412 = vmatprep.subr.mxu0 %v939
        %1413 = vmatpush1.msra.mxu0 %v938
        %1414 = vmatprep.subr.mxu0 %v935
        %1415 = vmatpush1.msra.mxu0 %v934
        %1416 = vmatprep.subr.mxu0 %v931
        %1417 = vmatpush1.msra.mxu0 %v930
        %1418 = vmatprep.subr.mxu0 %v927
        %1419 = vmatpush1.msra.mxu0 %v926
        %1420 = vmatprep.subr.mxu0 %v923
        %1421 = vmatpush1.msra.mxu0 %v922
        %1422 = vmatprep.subr.mxu0 %v919
        %1423 = vmatpush1.msra.mxu0 %v918
        %1424 = vmatprep.subr.mxu0 %v915
        %1425 = vmatpush1.msra.mxu0 %v914
        %1426 = vmatprep.subr.mxu0 %v911
        %1427 = vmatpush1.msra.mxu0 %v910
        %1428 = vmatprep.subr.mxu0 %v907
        %1429 = vmatpush1.msra.mxu0 %v906
        %1430 = vmatprep.subr.mxu0 %v903
        %1431 = vmatpush1.msra.mxu0 %v902
        %1432 = vmatprep.subr.mxu0 %v899
        %1433 = vmatpush1.msra.mxu0 %v898
        %1434 = vmatprep.subr.mxu0 %v895
        %1435 = vmatpush1.msra.mxu0 %v894
        %1436 = vmatprep.subr.mxu0 %v891
        %1437 = vmatpush1.msra.mxu0 %v890
        %1438 = vmatprep.subr.mxu0 %v887
        %1439 = vmatpush1.msra.mxu0 %v886
        %1440 = vmatprep.subr.mxu0 %v883
        %1441 = vmatpush1.msra.mxu0 %v882
        %1442 = vmatprep.subr.mxu0 %v879
        %1443 = vmatpush1.msra.mxu0 %v878
        %1444 = vmatprep.subr.mxu0 %v1003
        %1445 = vmatpush2.msra.mxu0 %v1002
        %1446 = vmatprep.subr.mxu0 %v999
        %1447 = vmatpush2.msra.mxu0 %v998
        %1448 = vmatprep.subr.mxu0 %v995
        %1449 = vmatpush2.msra.mxu0 %v994
        %1450 = vmatprep.subr.mxu0 %v991
        %1451 = vmatpush2.msra.mxu0 %v990
        %1452 = vmatprep.subr.mxu0 %v987
        %1453 = vmatpush2.msra.mxu0 %v986
        %1454 = vmatprep.subr.mxu0 %v983
        %1455 = vmatpush2.msra.mxu0 %v982
        %1456 = vmatprep.subr.mxu0 %v979
        %1457 = vmatpush2.msra.mxu0 %v978
        %1458 = vmatprep.subr.mxu0 %v975
        %1459 = vmatpush2.msra.mxu0 %v974
        %1460 = vmatprep.subr.mxu0 %v971
        %1461 = vmatpush2.msra.mxu0 %v970
        %1462 = vmatprep.subr.mxu0 %v967
        %1463 = vmatpush2.msra.mxu0 %v966
        %1464 = vmatprep.subr.mxu0 %v963
        %1465 = vmatpush2.msra.mxu0 %v962
        %1466 = vmatprep.subr.mxu0 %v959
        %1467 = vmatpush2.msra.mxu0 %v958
        %1468 = vmatprep.subr.mxu0 %v955
        %1469 = vmatpush2.msra.mxu0 %v954
        %1470 = vmatprep.subr.mxu0 %v951
        %1471 = vmatpush2.msra.mxu0 %v950
        %1472 = vmatprep.subr.mxu0 %v947
        %1473 = vmatpush2.msra.mxu0 %v946
        %1474 = vmatprep.subr.mxu0 %v943
        %1475 = vmatpush2.msra.mxu0 %v942
        %1476 = vmatprep.mubr.f32.mxu0 %v863
        %1477 = vmatmul.mubr.f32.gmra.mxu0 %v862
        %v1478 = vpop.f32.mrf.mxu0
        %v1479 = vadd.f32 %v1395, %v1478
        %v1480 = vpop.f32.mrf.mxu0
        %v1481 = vadd.f32 %v1399, %v1480
        %1482 = vmatprep.mubr.f32.mxu0 %v865
        %1483 = vmatmul.mubr.f32.gmra.mxu0 %v864
        %v1484 = vpop.f32.mrf.mxu0
        %v1485 = vadd.f32 %v1395, %v1484
        %v1486 = vpop.f32.mrf.mxu0
        %v1487 = vadd.f32 %v1399, %v1486
        %1488 = vdwg.mxu0
        %1489 = vmatprep.subr.mxu0 %v1067
        %1490 = vmatpush1.msra.mxu0 %v1066
        %1491 = vmatprep.subr.mxu0 %v1063
        %1492 = vmatpush1.msra.mxu0 %v1062
        %1493 = vmatprep.subr.mxu0 %v1059
        %1494 = vmatpush1.msra.mxu0 %v1058
        %1495 = vmatprep.subr.mxu0 %v1055
        %1496 = vmatpush1.msra.mxu0 %v1054
        %1497 = vmatprep.subr.mxu0 %v1051
        %1498 = vmatpush1.msra.mxu0 %v1050
        %1499 = vmatprep.subr.mxu0 %v1047
        %1500 = vmatpush1.msra.mxu0 %v1046
        %1501 = vmatprep.subr.mxu0 %v1043
        %1502 = vmatpush1.msra.mxu0 %v1042
        %1503 = vmatprep.subr.mxu0 %v1039
        %1504 = vmatpush1.msra.mxu0 %v1038
        %1505 = vmatprep.subr.mxu0 %v1035
        %1506 = vmatpush1.msra.mxu0 %v1034
        %1507 = vmatprep.subr.mxu0 %v1031
        %1508 = vmatpush1.msra.mxu0 %v1030
        %1509 = vmatprep.subr.mxu0 %v1027
        %1510 = vmatpush1.msra.mxu0 %v1026
        %1511 = vmatprep.subr.mxu0 %v1023
        %1512 = vmatpush1.msra.mxu0 %v1022
        %1513 = vmatprep.subr.mxu0 %v1019
        %1514 = vmatpush1.msra.mxu0 %v1018
        %1515 = vmatprep.subr.mxu0 %v1015
        %1516 = vmatpush1.msra.mxu0 %v1014
        %1517 = vmatprep.subr.mxu0 %v1011
        %1518 = vmatpush1.msra.mxu0 %v1010
        %1519 = vmatprep.subr.mxu0 %v1007
        %1520 = vmatpush1.msra.mxu0 %v1006
        %1521 = vmatprep.subr.mxu0 %v1131
        %1522 = vmatpush2.msra.mxu0 %v1130
        %1523 = vmatprep.subr.mxu0 %v1127
        %1524 = vmatpush2.msra.mxu0 %v1126
        %1525 = vmatprep.subr.mxu0 %v1123
        %1526 = vmatpush2.msra.mxu0 %v1122
        %1527 = vmatprep.subr.mxu0 %v1119
        %1528 = vmatpush2.msra.mxu0 %v1118
        %1529 = vmatprep.subr.mxu0 %v1115
        %1530 = vmatpush2.msra.mxu0 %v1114
        %1531 = vmatprep.subr.mxu0 %v1111
        %1532 = vmatpush2.msra.mxu0 %v1110
        %1533 = vmatprep.subr.mxu0 %v1107
        %1534 = vmatpush2.msra.mxu0 %v1106
        %1535 = vmatprep.subr.mxu0 %v1103
        %1536 = vmatpush2.msra.mxu0 %v1102
        %1537 = vmatprep.subr.mxu0 %v1099
        %1538 = vmatpush2.msra.mxu0 %v1098
        %1539 = vmatprep.subr.mxu0 %v1095
        %1540 = vmatpush2.msra.mxu0 %v1094
        %1541 = vmatprep.subr.mxu0 %v1091
        %1542 = vmatpush2.msra.mxu0 %v1090
        %1543 = vmatprep.subr.mxu0 %v1087
        %1544 = vmatpush2.msra.mxu0 %v1086
        %1545 = vmatprep.subr.mxu0 %v1083
        %1546 = vmatpush2.msra.mxu0 %v1082
        %1547 = vmatprep.subr.mxu0 %v1079
        %1548 = vmatpush2.msra.mxu0 %v1078
        %1549 = vmatprep.subr.mxu0 %v1075
        %1550 = vmatpush2.msra.mxu0 %v1074
        %1551 = vmatprep.subr.mxu0 %v1071
        %1552 = vmatpush2.msra.mxu0 %v1070
        %1553 = vmatprep.mubr.f32.mxu0 %v692
        %1554 = vmatmul.mubr.f32.gmra.mxu0 %v690
        %v1555 = vpop.f32.mrf.mxu0
        %v1556 = vadd.f32 %v1479, %v1555
        %v1557 = vpop.f32.mrf.mxu0
        %v1558 = vadd.f32 %v1481, %v1557
        %1559 = vmatprep.mubr.f32.mxu0 %v698
        %1560 = vmatmul.mubr.f32.gmra.mxu0 %v696
        %v1561 = vpop.f32.mrf.mxu0
        %v1562 = vadd.f32 %v1485, %v1561
        %v1563 = vpop.f32.mrf.mxu0
        %v1564 = vadd.f32 %v1487, %v1563
        %1565 = vdwg.mxu0
        %1566 = vmatprep.subr.mxu0 %v1195
        %1567 = vmatpush1.msra.mxu0 %v1194
        %1568 = vmatprep.subr.mxu0 %v1191
        %1569 = vmatpush1.msra.mxu0 %v1190
        %1570 = vmatprep.subr.mxu0 %v1187
        %1571 = vmatpush1.msra.mxu0 %v1186
        %1572 = vmatprep.subr.mxu0 %v1183
        %1573 = vmatpush1.msra.mxu0 %v1182
        %1574 = vmatprep.subr.mxu0 %v1179
        %1575 = vmatpush1.msra.mxu0 %v1178
        %1576 = vmatprep.subr.mxu0 %v1175
        %1577 = vmatpush1.msra.mxu0 %v1174
        %1578 = vmatprep.subr.mxu0 %v1171
        %1579 = vmatpush1.msra.mxu0 %v1170
        %1580 = vmatprep.subr.mxu0 %v1167
        %1581 = vmatpush1.msra.mxu0 %v1166
        %1582 = vmatprep.subr.mxu0 %v1163
        %1583 = vmatpush1.msra.mxu0 %v1162
        %1584 = vmatprep.subr.mxu0 %v1159
        %1585 = vmatpush1.msra.mxu0 %v1158
        %1586 = vmatprep.subr.mxu0 %v1155
        %1587 = vmatpush1.msra.mxu0 %v1154
        %1588 = vmatprep.subr.mxu0 %v1151
        %1589 = vmatpush1.msra.mxu0 %v1150
        %1590 = vmatprep.subr.mxu0 %v1147
        %1591 = vmatpush1.msra.mxu0 %v1146
        %1592 = vmatprep.subr.mxu0 %v1143
        %1593 = vmatpush1.msra.mxu0 %v1142
        %1594 = vmatprep.subr.mxu0 %v1139
        %1595 = vmatpush1.msra.mxu0 %v1138
        %1596 = vmatprep.subr.mxu0 %v1135
        %1597 = vmatpush1.msra.mxu0 %v1134
        %1598 = vmatprep.subr.mxu0 %v1259
        %1599 = vmatpush2.msra.mxu0 %v1258
        %1600 = vmatprep.subr.mxu0 %v1255
        %1601 = vmatpush2.msra.mxu0 %v1254
        %1602 = vmatprep.subr.mxu0 %v1251
        %1603 = vmatpush2.msra.mxu0 %v1250
        %1604 = vmatprep.subr.mxu0 %v1247
        %1605 = vmatpush2.msra.mxu0 %v1246
        %1606 = vmatprep.subr.mxu0 %v1243
        %1607 = vmatpush2.msra.mxu0 %v1242
        %1608 = vmatprep.subr.mxu0 %v1239
        %1609 = vmatpush2.msra.mxu0 %v1238
        %1610 = vmatprep.subr.mxu0 %v1235
        %1611 = vmatpush2.msra.mxu0 %v1234
        %1612 = vmatprep.subr.mxu0 %v1231
        %1613 = vmatpush2.msra.mxu0 %v1230
        %1614 = vmatprep.subr.mxu0 %v1227
        %1615 = vmatpush2.msra.mxu0 %v1226
        %1616 = vmatprep.subr.mxu0 %v1223
        %1617 = vmatpush2.msra.mxu0 %v1222
        %1618 = vmatprep.subr.mxu0 %v1219
        %1619 = vmatpush2.msra.mxu0 %v1218
        %1620 = vmatprep.subr.mxu0 %v1215
        %1621 = vmatpush2.msra.mxu0 %v1214
        %1622 = vmatprep.subr.mxu0 %v1211
        %1623 = vmatpush2.msra.mxu0 %v1210
        %1624 = vmatprep.subr.mxu0 %v1207
        %1625 = vmatpush2.msra.mxu0 %v1206
        %1626 = vmatprep.subr.mxu0 %v1203
        %1627 = vmatpush2.msra.mxu0 %v1202
        %1628 = vmatprep.subr.mxu0 %v1199
        %1629 = vmatpush2.msra.mxu0 %v1198
        %1630 = vmatprep.mubr.f32.mxu0 %v846
        %1631 = vmatmul.mubr.f32.gmra.mxu0 %v844
        %v1632 = vpop.f32.mrf.mxu0
        %v1633 = vadd.f32 %v1556, %v1632
        %v1634 = vpop.f32.mrf.mxu0
        %v1635 = vadd.f32 %v1558, %v1634
        %1636 = vmatprep.mubr.f32.mxu0 %v852
        %1637 = vmatmul.mubr.f32.gmra.mxu0 %v850
        %v1638 = vpop.f32.mrf.mxu0
        %v1639 = vadd.f32 %v1562, %v1638
        %v1640 = vpop.f32.mrf.mxu0
        %v1641 = vadd.f32 %v1564, %v1640
        %1642 = vdwg.mxu0
        %1643 = vmatprep.subr.mxu0 %v1323
        %1644 = vmatpush1.msra.mxu0 %v1322
        %1645 = vmatprep.subr.mxu0 %v1319
        %1646 = vmatpush1.msra.mxu0 %v1318
        %1647 = vmatprep.subr.mxu0 %v1315
        %1648 = vmatpush1.msra.mxu0 %v1314
        %1649 = vmatprep.subr.mxu0 %v1311
        %1650 = vmatpush1.msra.mxu0 %v1310
        %1651 = vmatprep.subr.mxu0 %v1307
        %1652 = vmatpush1.msra.mxu0 %v1306
        %1653 = vmatprep.subr.mxu0 %v1303
        %1654 = vmatpush1.msra.mxu0 %v1302
        %1655 = vmatprep.subr.mxu0 %v1299
        %1656 = vmatpush1.msra.mxu0 %v1298
        %1657 = vmatprep.subr.mxu0 %v1295
        %1658 = vmatpush1.msra.mxu0 %v1294
        %1659 = vmatprep.subr.mxu0 %v1291
        %1660 = vmatpush1.msra.mxu0 %v1290
        %1661 = vmatprep.subr.mxu0 %v1287
        %1662 = vmatpush1.msra.mxu0 %v1286
        %1663 = vmatprep.subr.mxu0 %v1283
        %1664 = vmatpush1.msra.mxu0 %v1282
        %1665 = vmatprep.subr.mxu0 %v1279
        %1666 = vmatpush1.msra.mxu0 %v1278
        %1667 = vmatprep.subr.mxu0 %v1275
        %1668 = vmatpush1.msra.mxu0 %v1274
        %1669 = vmatprep.subr.mxu0 %v1271
        %1670 = vmatpush1.msra.mxu0 %v1270
        %1671 = vmatprep.subr.mxu0 %v1267
        %1672 = vmatpush1.msra.mxu0 %v1266
        %1673 = vmatprep.subr.mxu0 %v1263
        %1674 = vmatpush1.msra.mxu0 %v1262
        %1675 = vmatprep.subr.mxu0 %v1387
        %1676 = vmatpush2.msra.mxu0 %v1386
        %1677 = vmatprep.subr.mxu0 %v1383
        %1678 = vmatpush2.msra.mxu0 %v1382
        %1679 = vmatprep.subr.mxu0 %v1379
        %1680 = vmatpush2.msra.mxu0 %v1378
        %1681 = vmatprep.subr.mxu0 %v1375
        %1682 = vmatpush2.msra.mxu0 %v1374
        %1683 = vmatprep.subr.mxu0 %v1371
        %1684 = vmatpush2.msra.mxu0 %v1370
        %1685 = vmatprep.subr.mxu0 %v1367
        %1686 = vmatpush2.msra.mxu0 %v1366
        %1687 = vmatprep.subr.mxu0 %v1363
        %1688 = vmatpush2.msra.mxu0 %v1362
        %1689 = vmatprep.subr.mxu0 %v1359
        %1690 = vmatpush2.msra.mxu0 %v1358
        %1691 = vmatprep.subr.mxu0 %v1355
        %1692 = vmatpush2.msra.mxu0 %v1354
        %1693 = vmatprep.subr.mxu0 %v1351
        %1694 = vmatpush2.msra.mxu0 %v1350
        %1695 = vmatprep.subr.mxu0 %v1347
        %1696 = vmatpush2.msra.mxu0 %v1346
        %1697 = vmatprep.subr.mxu0 %v1343
        %1698 = vmatpush2.msra.mxu0 %v1342
        %1699 = vmatprep.subr.mxu0 %v1339
        %1700 = vmatpush2.msra.mxu0 %v1338
        %1701 = vmatprep.subr.mxu0 %v1335
        %1702 = vmatpush2.msra.mxu0 %v1334
        %1703 = vmatprep.subr.mxu0 %v1331
        %1704 = vmatpush2.msra.mxu0 %v1330
        %1705 = vmatprep.subr.mxu0 %v1327
        %1706 = vmatpush2.msra.mxu0 %v1326
        %1707 = vmatprep.mubr.f32.mxu0 %v875
        %1708 = vmatmul.mubr.f32.gmra.mxu0 %v874
        %v1709 = vpop.f32.mrf.mxu0
        %v1710 = vadd.f32 %v1633, %v1709
        %v1711 = vpop.f32.mrf.mxu0
        %v1712 = vadd.f32 %v1635, %v1711
        %1713 = vmatprep.mubr.f32.mxu0 %v877
        %1714 = vmatmul.mubr.f32.gmra.mxu0 %v876
        %v1715 = vpop.f32.mrf.mxu0
        %v1716 = vadd.f32 %v1639, %v1715
        %v1717 = vpop.f32.mrf.mxu0
        %v1718 = vadd.f32 %v1641, %v1717
        %1719 = vdwg.mxu0
        %1720 = vmatprep.subr.mxu0 %v941
        %1721 = vmatpush1.msra.mxu0 %v940
        %1722 = vmatprep.subr.mxu0 %v937
        %1723 = vmatpush1.msra.mxu0 %v936
        %1724 = vmatprep.subr.mxu0 %v933
        %1725 = vmatpush1.msra.mxu0 %v932
        %1726 = vmatprep.subr.mxu0 %v929
        %1727 = vmatpush1.msra.mxu0 %v928
        %1728 = vmatprep.subr.mxu0 %v925
        %1729 = vmatpush1.msra.mxu0 %v924
        %1730 = vmatprep.subr.mxu0 %v921
        %1731 = vmatpush1.msra.mxu0 %v920
        %1732 = vmatprep.subr.mxu0 %v917
        %1733 = vmatpush1.msra.mxu0 %v916
        %1734 = vmatprep.subr.mxu0 %v913
        %1735 = vmatpush1.msra.mxu0 %v912
        %1736 = vmatprep.subr.mxu0 %v909
        %1737 = vmatpush1.msra.mxu0 %v908
        %1738 = vmatprep.subr.mxu0 %v905
        %1739 = vmatpush1.msra.mxu0 %v904
        %1740 = vmatprep.subr.mxu0 %v901
        %1741 = vmatpush1.msra.mxu0 %v900
        %1742 = vmatprep.subr.mxu0 %v897
        %1743 = vmatpush1.msra.mxu0 %v896
        %1744 = vmatprep.subr.mxu0 %v893
        %1745 = vmatpush1.msra.mxu0 %v892
        %1746 = vmatprep.subr.mxu0 %v889
        %1747 = vmatpush1.msra.mxu0 %v888
        %1748 = vmatprep.subr.mxu0 %v885
        %1749 = vmatpush1.msra.mxu0 %v884
        %1750 = vmatprep.subr.mxu0 %v881
        %1751 = vmatpush1.msra.mxu0 %v880
        %1752 = vmatprep.subr.mxu0 %v1005
        %1753 = vmatpush2.msra.mxu0 %v1004
        %1754 = vmatprep.subr.mxu0 %v1001
        %1755 = vmatpush2.msra.mxu0 %v1000
        %1756 = vmatprep.subr.mxu0 %v997
        %1757 = vmatpush2.msra.mxu0 %v996
        %1758 = vmatprep.subr.mxu0 %v993
        %1759 = vmatpush2.msra.mxu0 %v992
        %1760 = vmatprep.subr.mxu0 %v989
        %1761 = vmatpush2.msra.mxu0 %v988
        %1762 = vmatprep.subr.mxu0 %v985
        %1763 = vmatpush2.msra.mxu0 %v984
        %1764 = vmatprep.subr.mxu0 %v981
        %1765 = vmatpush2.msra.mxu0 %v980
        %1766 = vmatprep.subr.mxu0 %v977
        %1767 = vmatpush2.msra.mxu0 %v976
        %1768 = vmatprep.subr.mxu0 %v973
        %1769 = vmatpush2.msra.mxu0 %v972
        %1770 = vmatprep.subr.mxu0 %v969
        %1771 = vmatpush2.msra.mxu0 %v968
        %1772 = vmatprep.subr.mxu0 %v965
        %1773 = vmatpush2.msra.mxu0 %v964
        %1774 = vmatprep.subr.mxu0 %v961
        %1775 = vmatpush2.msra.mxu0 %v960
        %1776 = vmatprep.subr.mxu0 %v957
        %1777 = vmatpush2.msra.mxu0 %v956
        %1778 = vmatprep.subr.mxu0 %v953
        %1779 = vmatpush2.msra.mxu0 %v952
        %1780 = vmatprep.subr.mxu0 %v949
        %1781 = vmatpush2.msra.mxu0 %v948
        %1782 = vmatprep.subr.mxu0 %v945
        %1783 = vmatpush2.msra.mxu0 %v944
        %1784 = vmatprep.mubr.f32.mxu0 %v863
        %1785 = vmatmul.mubr.f32.gmra.mxu0 %v862
        %v1786 = vpop.f32.mrf.mxu0
        %v1787 = vadd.f32 %v1403, %v1786
        %v1788 = vpop.f32.mrf.mxu0
        %v1789 = vadd.f32 %v1407, %v1788
        %1790 = vmatprep.mubr.f32.mxu0 %v865
        %1791 = vmatmul.mubr.f32.gmra.mxu0 %v864
        %v1792 = vpop.f32.mrf.mxu0
        %v1793 = vadd.f32 %v1403, %v1792
        %v1794 = vpop.f32.mrf.mxu0
        %v1795 = vadd.f32 %v1407, %v1794
        %1796 = vdwg.mxu0
        %1797 = vmatprep.subr.mxu0 %v1069
        %1798 = vmatpush1.msra.mxu0 %v1068
        %1799 = vmatprep.subr.mxu0 %v1065
        %1800 = vmatpush1.msra.mxu0 %v1064
        %1801 = vmatprep.subr.mxu0 %v1061
        %1802 = vmatpush1.msra.mxu0 %v1060
        %1803 = vmatprep.subr.mxu0 %v1057
        %1804 = vmatpush1.msra.mxu0 %v1056
        %1805 = vmatprep.subr.mxu0 %v1053
        %1806 = vmatpush1.msra.mxu0 %v1052
        %1807 = vmatprep.subr.mxu0 %v1049
        %1808 = vmatpush1.msra.mxu0 %v1048
        %1809 = vmatprep.subr.mxu0 %v1045
        %1810 = vmatpush1.msra.mxu0 %v1044
        %1811 = vmatprep.subr.mxu0 %v1041
        %1812 = vmatpush1.msra.mxu0 %v1040
        %1813 = vmatprep.subr.mxu0 %v1037
        %1814 = vmatpush1.msra.mxu0 %v1036
        %1815 = vmatprep.subr.mxu0 %v1033
        %1816 = vmatpush1.msra.mxu0 %v1032
        %1817 = vmatprep.subr.mxu0 %v1029
        %1818 = vmatpush1.msra.mxu0 %v1028
        %1819 = vmatprep.subr.mxu0 %v1025
        %1820 = vmatpush1.msra.mxu0 %v1024
        %1821 = vmatprep.subr.mxu0 %v1021
        %1822 = vmatpush1.msra.mxu0 %v1020
        %1823 = vmatprep.subr.mxu0 %v1017
        %1824 = vmatpush1.msra.mxu0 %v1016
        %1825 = vmatprep.subr.mxu0 %v1013
        %1826 = vmatpush1.msra.mxu0 %v1012
        %1827 = vmatprep.subr.mxu0 %v1009
        %1828 = vmatpush1.msra.mxu0 %v1008
        %1829 = vmatprep.subr.mxu0 %v1133
        %1830 = vmatpush2.msra.mxu0 %v1132
        %1831 = vmatprep.subr.mxu0 %v1129
        %1832 = vmatpush2.msra.mxu0 %v1128
        %1833 = vmatprep.subr.mxu0 %v1125
        %1834 = vmatpush2.msra.mxu0 %v1124
        %1835 = vmatprep.subr.mxu0 %v1121
        %1836 = vmatpush2.msra.mxu0 %v1120
        %1837 = vmatprep.subr.mxu0 %v1117
        %1838 = vmatpush2.msra.mxu0 %v1116
        %1839 = vmatprep.subr.mxu0 %v1113
        %1840 = vmatpush2.msra.mxu0 %v1112
        %1841 = vmatprep.subr.mxu0 %v1109
        %1842 = vmatpush2.msra.mxu0 %v1108
        %1843 = vmatprep.subr.mxu0 %v1105
        %1844 = vmatpush2.msra.mxu0 %v1104
        %1845 = vmatprep.subr.mxu0 %v1101
        %1846 = vmatpush2.msra.mxu0 %v1100
        %1847 = vmatprep.subr.mxu0 %v1097
        %1848 = vmatpush2.msra.mxu0 %v1096
        %1849 = vmatprep.subr.mxu0 %v1093
        %1850 = vmatpush2.msra.mxu0 %v1092
        %1851 = vmatprep.subr.mxu0 %v1089
        %1852 = vmatpush2.msra.mxu0 %v1088
        %1853 = vmatprep.subr.mxu0 %v1085
        %1854 = vmatpush2.msra.mxu0 %v1084
        %1855 = vmatprep.subr.mxu0 %v1081
        %1856 = vmatpush2.msra.mxu0 %v1080
        %1857 = vmatprep.subr.mxu0 %v1077
        %1858 = vmatpush2.msra.mxu0 %v1076
        %1859 = vmatprep.subr.mxu0 %v1073
        %1860 = vmatpush2.msra.mxu0 %v1072
        %1861 = vmatprep.mubr.f32.mxu0 %v692
        %1862 = vmatmul.mubr.f32.gmra.mxu0 %v690
        %v1863 = vpop.f32.mrf.mxu0
        %v1864 = vadd.f32 %v1787, %v1863
        %v1865 = vpop.f32.mrf.mxu0
        %v1866 = vadd.f32 %v1789, %v1865
        %1867 = vmatprep.mubr.f32.mxu0 %v698
        %1868 = vmatmul.mubr.f32.gmra.mxu0 %v696
        %v1869 = vpop.f32.mrf.mxu0
        %v1870 = vadd.f32 %v1793, %v1869
        %v1871 = vpop.f32.mrf.mxu0
        %v1872 = vadd.f32 %v1795, %v1871
        %1873 = vdwg.mxu0
        %1874 = vmatprep.subr.mxu0 %v1197
        %1875 = vmatpush1.msra.mxu0 %v1196
        %1876 = vmatprep.subr.mxu0 %v1193
        %1877 = vmatpush1.msra.mxu0 %v1192
        %1878 = vmatprep.subr.mxu0 %v1189
        %1879 = vmatpush1.msra.mxu0 %v1188
        %1880 = vmatprep.subr.mxu0 %v1185
        %1881 = vmatpush1.msra.mxu0 %v1184
        %1882 = vmatprep.subr.mxu0 %v1181
        %1883 = vmatpush1.msra.mxu0 %v1180
        %1884 = vmatprep.subr.mxu0 %v1177
        %1885 = vmatpush1.msra.mxu0 %v1176
        %1886 = vmatprep.subr.mxu0 %v1173
        %1887 = vmatpush1.msra.mxu0 %v1172
        %1888 = vmatprep.subr.mxu0 %v1169
        %1889 = vmatpush1.msra.mxu0 %v1168
        %1890 = vmatprep.subr.mxu0 %v1165
        %1891 = vmatpush1.msra.mxu0 %v1164
        %1892 = vmatprep.subr.mxu0 %v1161
        %1893 = vmatpush1.msra.mxu0 %v1160
        %1894 = vmatprep.subr.mxu0 %v1157
        %1895 = vmatpush1.msra.mxu0 %v1156
        %1896 = vmatprep.subr.mxu0 %v1153
        %1897 = vmatpush1.msra.mxu0 %v1152
        %1898 = vmatprep.subr.mxu0 %v1149
        %1899 = vmatpush1.msra.mxu0 %v1148
        %1900 = vmatprep.subr.mxu0 %v1145
        %1901 = vmatpush1.msra.mxu0 %v1144
        %1902 = vmatprep.subr.mxu0 %v1141
        %1903 = vmatpush1.msra.mxu0 %v1140
        %1904 = vmatprep.subr.mxu0 %v1137
        %1905 = vmatpush1.msra.mxu0 %v1136
        %1906 = vmatprep.subr.mxu0 %v1261
        %1907 = vmatpush2.msra.mxu0 %v1260
        %1908 = vmatprep.subr.mxu0 %v1257
        %1909 = vmatpush2.msra.mxu0 %v1256
        %1910 = vmatprep.subr.mxu0 %v1253
        %1911 = vmatpush2.msra.mxu0 %v1252
        %1912 = vmatprep.subr.mxu0 %v1249
        %1913 = vmatpush2.msra.mxu0 %v1248
        %1914 = vmatprep.subr.mxu0 %v1245
        %1915 = vmatpush2.msra.mxu0 %v1244
        %1916 = vmatprep.subr.mxu0 %v1241
        %1917 = vmatpush2.msra.mxu0 %v1240
        %1918 = vmatprep.subr.mxu0 %v1237
        %1919 = vmatpush2.msra.mxu0 %v1236
        %1920 = vmatprep.subr.mxu0 %v1233
        %1921 = vmatpush2.msra.mxu0 %v1232
        %1922 = vmatprep.subr.mxu0 %v1229
        %1923 = vmatpush2.msra.mxu0 %v1228
        %1924 = vmatprep.subr.mxu0 %v1225
        %1925 = vmatpush2.msra.mxu0 %v1224
        %1926 = vmatprep.subr.mxu0 %v1221
        %1927 = vmatpush2.msra.mxu0 %v1220
        %1928 = vmatprep.subr.mxu0 %v1217
        %1929 = vmatpush2.msra.mxu0 %v1216
        %1930 = vmatprep.subr.mxu0 %v1213
        %1931 = vmatpush2.msra.mxu0 %v1212
        %1932 = vmatprep.subr.mxu0 %v1209
        %1933 = vmatpush2.msra.mxu0 %v1208
        %1934 = vmatprep.subr.mxu0 %v1205
        %1935 = vmatpush2.msra.mxu0 %v1204
        %1936 = vmatprep.subr.mxu0 %v1201
        %1937 = vmatpush2.msra.mxu0 %v1200
        %1938 = vmatprep.mubr.f32.mxu0 %v846
        %1939 = vmatmul.mubr.f32.gmra.mxu0 %v844
        %v1940 = vpop.f32.mrf.mxu0
        %v1941 = vadd.f32 %v1864, %v1940
        %v1942 = vpop.f32.mrf.mxu0
        %v1943 = vadd.f32 %v1866, %v1942
        %1944 = vmatprep.mubr.f32.mxu0 %v852
        %1945 = vmatmul.mubr.f32.gmra.mxu0 %v850
        %v1946 = vpop.f32.mrf.mxu0
        %v1947 = vadd.f32 %v1870, %v1946
        %v1948 = vpop.f32.mrf.mxu0
        %v1949 = vadd.f32 %v1872, %v1948
        %1950 = vdwg.mxu0
        %1951 = vmatprep.subr.mxu0 %v1325
        %1952 = vmatpush1.msra.mxu0 %v1324
        %1953 = vmatprep.subr.mxu0 %v1321
        %1954 = vmatpush1.msra.mxu0 %v1320
        %1955 = vmatprep.subr.mxu0 %v1317
        %1956 = vmatpush1.msra.mxu0 %v1316
        %1957 = vmatprep.subr.mxu0 %v1313
        %1958 = vmatpush1.msra.mxu0 %v1312
        %1959 = vmatprep.subr.mxu0 %v1309
        %1960 = vmatpush1.msra.mxu0 %v1308
        %1961 = vmatprep.subr.mxu0 %v1305
        %1962 = vmatpush1.msra.mxu0 %v1304
        %1963 = vmatprep.subr.mxu0 %v1301
        %1964 = vmatpush1.msra.mxu0 %v1300
        %1965 = vmatprep.subr.mxu0 %v1297
        %1966 = vmatpush1.msra.mxu0 %v1296
        %1967 = vmatprep.subr.mxu0 %v1293
        %1968 = vmatpush1.msra.mxu0 %v1292
        %1969 = vmatprep.subr.mxu0 %v1289
        %1970 = vmatpush1.msra.mxu0 %v1288
        %1971 = vmatprep.subr.mxu0 %v1285
        %1972 = vmatpush1.msra.mxu0 %v1284
        %1973 = vmatprep.subr.mxu0 %v1281
        %1974 = vmatpush1.msra.mxu0 %v1280
        %1975 = vmatprep.subr.mxu0 %v1277
        %1976 = vmatpush1.msra.mxu0 %v1276
        %1977 = vmatprep.subr.mxu0 %v1273
        %1978 = vmatpush1.msra.mxu0 %v1272
        %1979 = vmatprep.subr.mxu0 %v1269
        %1980 = vmatpush1.msra.mxu0 %v1268
        %1981 = vmatprep.subr.mxu0 %v1265
        %1982 = vmatpush1.msra.mxu0 %v1264
        %1983 = vmatprep.subr.mxu0 %v1389
        %1984 = vmatpush2.msra.mxu0 %v1388
        %1985 = vmatprep.subr.mxu0 %v1385
        %1986 = vmatpush2.msra.mxu0 %v1384
        %1987 = vmatprep.subr.mxu0 %v1381
        %1988 = vmatpush2.msra.mxu0 %v1380
        %1989 = vmatprep.subr.mxu0 %v1377
        %1990 = vmatpush2.msra.mxu0 %v1376
        %1991 = vmatprep.subr.mxu0 %v1373
        %1992 = vmatpush2.msra.mxu0 %v1372
        %1993 = vmatprep.subr.mxu0 %v1369
        %1994 = vmatpush2.msra.mxu0 %v1368
        %1995 = vmatprep.subr.mxu0 %v1365
        %1996 = vmatpush2.msra.mxu0 %v1364
        %1997 = vmatprep.subr.mxu0 %v1361
        %1998 = vmatpush2.msra.mxu0 %v1360
        %1999 = vmatprep.subr.mxu0 %v1357
        %2000 = vmatpush2.msra.mxu0 %v1356
        %2001 = vmatprep.subr.mxu0 %v1353
        %2002 = vmatpush2.msra.mxu0 %v1352
        %2003 = vmatprep.subr.mxu0 %v1349
        %2004 = vmatpush2.msra.mxu0 %v1348
        %2005 = vmatprep.subr.mxu0 %v1345
        %2006 = vmatpush2.msra.mxu0 %v1344
        %2007 = vmatprep.subr.mxu0 %v1341
        %2008 = vmatpush2.msra.mxu0 %v1340
        %2009 = vmatprep.subr.mxu0 %v1337
        %2010 = vmatpush2.msra.mxu0 %v1336
        %2011 = vmatprep.subr.mxu0 %v1333
        %2012 = vmatpush2.msra.mxu0 %v1332
        %2013 = vmatprep.subr.mxu0 %v1329
        %2014 = vmatpush2.msra.mxu0 %v1328
        %2015 = vmatprep.mubr.f32.mxu0 %v875
        %2016 = vmatmul.mubr.f32.gmra.mxu0 %v874
        %v2017 = vpop.f32.mrf.mxu0
        %v2018 = vadd.f32 %v1941, %v2017
        %v2019 = vpop.f32.mrf.mxu0
        %v2020 = vadd.f32 %v1943, %v2019
        %2021 = vmatprep.mubr.f32.mxu0 %v877
        %2022 = vmatmul.mubr.f32.gmra.mxu0 %v876
        %v2023 = vpop.f32.mrf.mxu0
        %v2024 = vadd.f32 %v1947, %v2023
        %v2025 = vpop.f32.mrf.mxu0
        %v2026 = vadd.f32 %v1949, %v2025
        %2027 = vdwg.mxu0
        %v2028 = vmax.f32 %v1710, 0.0
        %v2029 = vmax.f32 %v1712, 0.0
        %v2030 = vmax.f32 %v2018, 0.0
        %v2031 = vmax.f32 %v2020, 0.0
        %v2032 = vmax.f32 %v1716, 0.0
        %v2033 = vmax.f32 %v1718, 0.0
        %v2034 = vmax.f32 %v2024, 0.0
        %v2035 = vmax.f32 %v2026, 0.0
        %2036 = vst [vmem:[%s283] sm:$0xff] %v2028
        %2037 = vst [vmem:[%s283 + $0x8] sm:$0xff] %v2029
        %2038 = vst [vmem:[%s283 + $0x10] sm:$0xff] %v2030
        %2039 = vst [vmem:[%s283 + $0x18] sm:$0xff] %v2031
        %2040 = vst [vmem:[%s283 + $0x20] sm:$0xff] %v2032
        %2041 = vst [vmem:[%s283 + $0x28] sm:$0xff] %v2033
        %2042 = vst [vmem:[%s283 + $0x30] sm:$0xff] %v2034
        %2043 = vst [vmem:[%s283 + $0x38] sm:$0xff] %v2035
        %s2044 = smul.u32 2, %s19
        %p2045 = scmp.lt.s32.totalorder %s2044, 3
        %s2046 = scalar_select %p2045, %s2044, 3
        %s2047 = smul.addr %s2046, 4
        %s2048 = smul.addr %s2047, 8
        %s2049 = scalar_lea.vmem %s5, %s2048
        // Predicated region
        $region57: #{decoder_conv_block_apply.1} parent=39 // pred_check
          %p2050 = pneg %p147
        $region58: #{decoder_conv_block_apply.1} parent=39 // pred_check_branch
          %2052 = sbr.rel (%p2050) target = $region60
        $region59: #{decoder_conv_block_apply.1} parent=39 // pred_region
          %s2053 = smul.u32 2, %s19
        $region60: #{decoder_conv_block_apply.1} parent=39 // pred_fallthru
          _
      $region40: #{decoder_conv_block_apply.1} parent=5 // pred_fallthru
        _
      %p2054 = scmp.le.s32.totalorder 2, %s14
      // Predicated region
      $region61: #{decoder_conv_block_apply.1} parent=5 // pred_check
        %p2055 = pneg %p2054
      $region62: #{decoder_conv_block_apply.1} parent=5 // pred_check_branch
        %2057 = sbr.rel (%p2055) target = $region64
      $region63: #{decoder_conv_block_apply.1} parent=5 // pred_region
        %s2058 = ssub.s32 %s14, 2
        // Predicated region
        $region65: #{decoder_conv_block_apply.1} parent=63 // pred_check
          %p2059 = pneg %p153
        $region66: #{decoder_conv_block_apply.1} parent=63 // pred_check_branch
          %2061 = sbr.rel (%p2059) target = $region68
        $region67: #{decoder_conv_block_apply.1} parent=63 // pred_region
          %s2062 = smul.u32 2, %s20
          %p2063 = scmp.lt.s32.totalorder %s2062, 3
          %s2064 = scalar_select %p2063, %s2062, 3
          %s2065 = smul.addr %s2064, 4
          %s2066 = smul.addr %s2065, 8
          %s2067 = scalar_lea.vmem %s5, %s2066
        $region68: #{decoder_conv_block_apply.1} parent=63 // pred_fallthru
          _
      $region64: #{decoder_conv_block_apply.1} parent=5 // pred_fallthru
        _
    $region6: #{decoder_conv_block_apply.1} parent=1 // loop_footer
      %s18 = sadd.s32 1, %s14
    $region7: #{decoder_conv_block_apply.1} parent=1 // loop_footer_branch
      %13 = sbr.rel target = $region3
    $region8: #{decoder_conv_block_apply.1} parent=1 // loop_exit
      _
    %2068 = vsyncpa [#allocation3], 1
    %s2069 = scalar_lea.sflag [#allocation3], 1
    %2070 = vsyncpa %s2069, 1
    %2071 = vsyncpa [#allocation5], 1
    %2072 = vsyncpa [#allocation8], 1

</llo_original>
